<compile_context>
chip_gen: v5e
topology: v5e:2x2
jax: 0.10.0
libtpu: 0.0.40
codegen_flags: <defaults>
</compile_context>

<pallas_src>
import math
import functools

import jax
import jax.numpy as jnp
from jax import lax
from jax.experimental import pallas as pl
from jax.experimental.pallas import tpu as pltpu


# ---------------------------------------------------------------------------
# Pallas kernel: full post-norm encoder STACK for one batch tile.
# grid = (batch_tiles, num_layers); the activation lives in x_scr (VMEM)
# across the layer axis, output is written only at the last layer.
# ---------------------------------------------------------------------------
def _encoder_stack_kernel(nhead, head_dim, seq_len, eps,
                          x_ref, pos_ref,
                          wqk_ref, wv_ref, wo_ref, w1_ref, w2_ref,
                          vecE_ref, vecF_ref,
                          out_ref, x_scr):
    l = pl.program_id(1)
    M, E = x_scr.shape                       # M = batch_tile * seq_len
    Bt = M // seq_len

    @pl.when(l == 0)
    def _():
        x_scr[...] = x_ref[...]              # load residual stream once per tile

    x = x_scr[...]                           # (M, E) float32
    pos = pos_ref[...]                       # (M, E)
    vec = vecE_ref[0]                        # (9, E): bq*, bk, bv, bo, g1, be1, g2, be2, b2
    wo = wo_ref[0]                           # (E, E)

    # ---- fused q/k in-projection (scale folded into Wq/bq) + value proj ----
    qk_in = x + pos
    qk = jnp.dot(qk_in, wqk_ref[0], preferred_element_type=jnp.float32)   # (M, 2E)
    v = jnp.dot(x, wv_ref[0], preferred_element_type=jnp.float32) + vec[2:3]
    q = qk[:, :E] + vec[0:1]                 # already scaled by 1/sqrt(head_dim)
    k = qk[:, E:] + vec[1:2]

    # ---- multi-head self-attention, batched over the batch tile ----
    # static loop over heads (nhead small); output projection folded per head
    # (accumulate o_h @ Wo[h]) so no concatenate is needed.
    attn = jnp.zeros((M, E), jnp.float32)
    for h in range(nhead):
        lo = h * head_dim
        hi = lo + head_dim
        qh = q[:, lo:hi].reshape(Bt, seq_len, head_dim)
        kh = k[:, lo:hi].reshape(Bt, seq_len, head_dim)
        vh = v[:, lo:hi].reshape(Bt, seq_len, head_dim)
        s = jnp.einsum("bqd,bkd->bqk", qh, kh,
                       preferred_element_type=jnp.float32)                # (Bt,S,S)
        s = s - jnp.max(s, axis=-1, keepdims=True)
        p = jnp.exp(s)
        p = p * pl.reciprocal(jnp.sum(p, axis=-1, keepdims=True), approx=False)
        oh = jnp.einsum("bqk,bkd->bqd", p, vh,
                        preferred_element_type=jnp.float32)               # (Bt,S,hd)
        attn = attn + jnp.dot(oh.reshape(M, head_dim), wo[lo:hi, :],
                              preferred_element_type=jnp.float32)
    attn = attn + vec[3:4]                   # out_proj bias

    # ---- residual + LayerNorm1 (eps = 1e-5, torch default) ----
    y = x + attn                             # dropout1 == identity (eval)
    mu = jnp.mean(y, axis=-1, keepdims=True)
    yc = y - mu
    var = jnp.mean(yc * yc, axis=-1, keepdims=True)
    y = yc * lax.rsqrt(var + eps) * vec[4:5] + vec[5:6]

    # ---- feed-forward: linear1 -> relu -> linear2 ----
    h1 = jnp.dot(y, w1_ref[0], preferred_element_type=jnp.float32) + vecF_ref[0]
    h1 = jnp.maximum(h1, 0.0)                # relu; inner dropout == identity
    ff = jnp.dot(h1, w2_ref[0], preferred_element_type=jnp.float32) + vec[8:9]

    # ---- residual + LayerNorm2 ----
    z = y + ff                               # dropout2 == identity (eval)
    mu = jnp.mean(z, axis=-1, keepdims=True)
    zc = z - mu
    var = jnp.mean(zc * zc, axis=-1, keepdims=True)
    z = zc * lax.rsqrt(var + eps) * vec[6:7] + vec[7:8]

    x_scr[...] = z                           # carry residual stream to next layer

    @pl.when(l == pl.num_programs(1) - 1)
    def _():
        out_ref[...] = z.astype(out_ref.dtype)


# ---------------------------------------------------------------------------
# Wrapper: single pallas_call over (batch_tiles, num_layers).
# ---------------------------------------------------------------------------
def transformer_forward_pallas(src, pos_embed, stacked, *, nhead, batch_tile=None):
    """src, pos_embed: (B, C, S, W) with d_model = C*W.  Returns (B, S, d_model)."""
    B, C, S, W = src.shape
    E = C * W
    L, _, F = stacked["w1"].shape            # w1: (L, E, F)
    head_dim = E // nhead

    # torch: permute(2,0,1,3).flatten(2) -> (S, B, E); we use a flat (B*S, E)
    # layout with the same feature ordering (C-major, W-minor).
    x = jnp.transpose(src, (0, 2, 1, 3)).reshape(B * S, E).astype(jnp.float32)
    pos = jnp.transpose(pos_embed, (0, 2, 1, 3)).reshape(B * S, E).astype(jnp.float32)

    Bt = B if batch_tile is None else batch_tile
    assert B % Bt == 0
    nb = B // Bt
    M = Bt * S                               # rows per grid step (multiple of 8)

    kernel = functools.partial(_encoder_stack_kernel, nhead, head_dim, S, 1e-5)

    def wspec(shape2):                       # per-layer weight block (indexed by l)
        return pl.BlockSpec((1,) + shape2, lambda b, l: (l, 0, 0))

    out = pl.pallas_call(
        kernel,
        out_shape=jax.ShapeDtypeStruct((B * S, E), jnp.float32),
        grid_spec=pltpu.PrefetchScalarGridSpec(
            num_scalar_prefetch=0,
            grid=(nb, L),
            in_specs=[
                pl.BlockSpec((M, E), lambda b, l: (b, 0)),   # x (loaded at l==0)
                pl.BlockSpec((M, E), lambda b, l: (b, 0)),   # pos
                wspec((E, 2 * E)),                           # [Wq|Wk] (q pre-scaled)
                wspec((E, E)),                               # Wv
                wspec((E, E)),                               # Wo
                wspec((E, F)),                               # W1
                wspec((F, E)),                               # W2
                wspec((9, E)),                               # packed E-sized vectors
                wspec((1, F)),                               # b1
            ],
            out_specs=pl.BlockSpec((M, E), lambda b, l: (b, 0)),
            scratch_shapes=[pltpu.VMEM((M, E), jnp.float32)],
        ),
        compiler_params=pltpu.CompilerParams(
            dimension_semantics=("parallel", "arbitrary")),
    )(x, pos, stacked["wqk"], stacked["wv"], stacked["wo"],
      stacked["w1"], stacked["w2"], stacked["vecE"], stacked["vecF"])

    return out.reshape(B, S, E)              # == memory.permute(1, 0, 2)


# ---------------------------------------------------------------------------
# Parameter construction (torch-layout, per layer) + kernel packing.
# ---------------------------------------------------------------------------
def xavier_uniform(key, shape):
    fan_out, fan_in = shape
    a = math.sqrt(6.0 / (fan_in + fan_out))
    return jax.random.uniform(key, shape, jnp.float32, -a, a)


def make_layer_params(key, d_model, nhead, dim_feedforward):
    """Raw per-layer params in PyTorch layout (weights are (out, in))."""
    E, F = d_model, dim_feedforward
    ks = jax.random.split(key, 12)
    small = lambda k, n: 0.1 * jax.random.normal(k, (n,), jnp.float32)
    return {
        "in_proj_w": xavier_uniform(ks[0], (3 * E, E)),
        "in_proj_b": small(ks[1], 3 * E),
        "out_proj_w": xavier_uniform(ks[2], (E, E)),
        "out_proj_b": small(ks[3], E),
        "w1": xavier_uniform(ks[4], (F, E)), "b1": small(ks[5], F),
        "w2": xavier_uniform(ks[6], (E, F)), "b2": small(ks[7], E),
        "g1": 1.0 + 0.1 * jax.random.normal(ks[8], (E,), jnp.float32),
        "be1": small(ks[9], E),
        "g2": 1.0 + 0.1 * jax.random.normal(ks[10], (E,), jnp.float32),
        "be2": small(ks[11], E),
    }


def stack_layer_params(layers, *, nhead):
    """Fuse q/k weights, fold the 1/sqrt(hd) scale, pack small vectors, and
    stack everything along a leading layer axis for the single pallas_call."""
    E = layers[0]["in_proj_w"].shape[1]
    scale = 1.0 / math.sqrt(E // nhead)
    wqk, wv, wo, w1, w2, vecE, vecF = [], [], [], [], [], [], []
    for p in layers:
        Wq = p["in_proj_w"][0:E] * scale
        Wk = p["in_proj_w"][E:2 * E]
        Wv = p["in_proj_w"][2 * E:]
        bq = p["in_proj_b"][0:E] * scale
        bk = p["in_proj_b"][E:2 * E]
        bv = p["in_proj_b"][2 * E:]
        wqk.append(jnp.concatenate([Wq.T, Wk.T], axis=1))        # (E, 2E)
        wv.append(Wv.T)                                          # (E, E)
        wo.append(p["out_proj_w"].T)                             # (E, E)
        w1.append(p["w1"].T)                                     # (E, F)
        w2.append(p["w2"].T)                                     # (F, E)
        vecE.append(jnp.stack([bq, bk, bv, p["out_proj_b"],
                               p["g1"], p["be1"], p["g2"], p["be2"],
                               p["b2"]], axis=0))                # (9, E)
        vecF.append(p["b1"].reshape(1, -1))                      # (1, F)
    stk = lambda xs: jnp.stack(xs, axis=0)
    return {"wqk": stk(wqk), "wv": stk(wv), "wo": stk(wo),
            "w1": stk(w1), "w2": stk(w2), "vecE": stk(vecE), "vecF": stk(vecF)}


# ---------------------------------------------------------------------------
# Pure-JAX reference (mirrors the PyTorch math on the raw per-layer params).
# ---------------------------------------------------------------------------
def reference_forward(src, pos_embed, layers, *, nhead):
    B, C, S, W = src.shape
    E = C * W
    hd = E // nhead
    x = jnp.transpose(src, (0, 2, 1, 3)).reshape(B, S, E)
    pos = jnp.transpose(pos_embed, (0, 2, 1, 3)).reshape(B, S, E)
    for p in layers:
        wq, wk, wv = p["in_proj_w"][0:E], p["in_proj_w"][E:2*E], p["in_proj_w"][2*E:]
        bq, bk, bv = p["in_proj_b"][0:E], p["in_proj_b"][E:2*E], p["in_proj_b"][2*E:]
        qk = x + pos
        q = qk @ wq.T + bq
        k = qk @ wk.T + bk
        v = x @ wv.T + bv
        q = q.reshape(B, S, nhead, hd).transpose(0, 2, 1, 3) / math.sqrt(hd)
        k = k.reshape(B, S, nhead, hd).transpose(0, 2, 1, 3)
        v = v.reshape(B, S, nhead, hd).transpose(0, 2, 1, 3)
        s = jnp.einsum("bhqd,bhkd->bhqk", q, k)
        a = jax.nn.softmax(s, axis=-1)
        o = jnp.einsum("bhqk,bhkd->bhqd", a, v).transpose(0, 2, 1, 3).reshape(B, S, E)
        o = o @ p["out_proj_w"].T + p["out_proj_b"]
        x = x + o
        mu = x.mean(-1, keepdims=True)
        var = ((x - mu) ** 2).mean(-1, keepdims=True)
        x = (x - mu) / jnp.sqrt(var + 1e-5) * p["g1"] + p["be1"]
        h = jnp.maximum(x @ p["w1"].T + p["b1"], 0.0)
        x = x + (h @ p["w2"].T + p["b2"])
        mu = x.mean(-1, keepdims=True)
        var = ((x - mu) ** 2).mean(-1, keepdims=True)
        x = (x - mu) / jnp.sqrt(var + 1e-5) * p["g2"] + p["be2"]
    return x


if __name__ == "__main__":
    # Small configuration consistent with the module: d_model = C * W
    B, C, S, W = 2, 4, 8, 8                  # -> d_model = 32, seq_len = 8
    d_model = C * W
    nhead = 4
    dim_feedforward = 64
    num_encoder_layers = 2                   # exercises the fused layer axis

    key = jax.random.PRNGKey(0)
    k_src, k_pos, k_par = jax.random.split(key, 3)
    src = jax.random.normal(k_src, (B, C, S, W), jnp.float32)
    pos_embed = jax.random.normal(k_pos, (B, C, S, W), jnp.float32)

    layer_keys = jax.random.split(k_par, num_encoder_layers)
    layers = [make_layer_params(k, d_model, nhead, dim_feedforward)
              for k in layer_keys]
    stacked = stack_layer_params(layers, nhead=nhead)

    out = transformer_forward_pallas(src, pos_embed, stacked, nhead=nhead)
    out = jax.block_until_ready(out)

    ref = reference_forward(src, pos_embed, layers, nhead=nhead)
    assert out.shape == (B, S, d_model)
    err = float(jnp.max(jnp.abs(out - ref)))
    assert jnp.allclose(out, ref, atol=5e-4, rtol=5e-4), f"max abs err {err}"

    print("KERNEL_OK")
</pallas_src>

<mosaic_0001>
module attributes {stable_mosaic.version = 11 : i64} {
  func.func @_encoder_stack_kernel(%arg0: i32, %arg1: i32, %arg2: memref<16x32xf32, #tpu.memory_space<vmem>>, %arg3: memref<16x32xf32, #tpu.memory_space<vmem>>, %arg4: memref<1x32x64xf32, #tpu.memory_space<vmem>>, %arg5: memref<1x32x32xf32, #tpu.memory_space<vmem>>, %arg6: memref<1x32x32xf32, #tpu.memory_space<vmem>>, %arg7: memref<1x32x64xf32, #tpu.memory_space<vmem>>, %arg8: memref<1x64x32xf32, #tpu.memory_space<vmem>>, %arg9: memref<1x9x32xf32, #tpu.memory_space<vmem>>, %arg10: memref<1x1x64xf32, #tpu.memory_space<vmem>>, %arg11: memref<16x32xf32, #tpu.memory_space<vmem>>, %arg12: memref<16x32xf32, #tpu.memory_space<vmem>>) attributes {dimension_semantics = [#tpu.dimension_semantics<parallel>, #tpu.dimension_semantics<arbitrary>], iteration_bounds = array<i64: 1, 2>, scalar_prefetch = 0 : i64, scratch_operands = 1 : i64, tpu.core_type = #tpu.core_type<tc>, window_params = [{transform_indices = @transform_0, window_bounds = array<i64: 16, 32>}, {transform_indices = @transform_1, window_bounds = array<i64: 16, 32>}, {transform_indices = @transform_2, window_bounds = array<i64: 1, 32, 64>}, {transform_indices = @transform_3, window_bounds = array<i64: 1, 32, 32>}, {transform_indices = @transform_4, window_bounds = array<i64: 1, 32, 32>}, {transform_indices = @transform_5, window_bounds = array<i64: 1, 32, 64>}, {transform_indices = @transform_6, window_bounds = array<i64: 1, 64, 32>}, {transform_indices = @transform_7, window_bounds = array<i64: 1, 9, 32>}, {transform_indices = @transform_8, window_bounds = array<i64: 1, 1, 64>}, {transform_indices = @transform_9, window_bounds = array<i64: 16, 32>}]} {
    %c0_i32 = arith.constant 0 : i32
    %0 = arith.cmpi eq, %arg1, %c0_i32 : i32
    %1 = arith.extui %0 : i1 to i32
    %c0_i32_0 = arith.constant 0 : i32
    %2 = arith.cmpi ne, %1, %c0_i32_0 : i32
    scf.if %2 {
      %c0_63 = arith.constant 0 : index
      %c0_64 = arith.constant 0 : index
      %184 = vector.load %arg2[%c0_63, %c0_64] : memref<16x32xf32, #tpu.memory_space<vmem>>, vector<16x32xf32>
      %c0_65 = arith.constant 0 : index
      %c0_66 = arith.constant 0 : index
      %185 = vector.load %arg12[%c0_65, %c0_66] : memref<16x32xf32, #tpu.memory_space<vmem>>, vector<16x32xf32>
      tpu.vector_store %arg12[%c0_65, %c0_66], %184 {strides = array<i32>} : memref<16x32xf32, #tpu.memory_space<vmem>>, vector<16x32xf32>,
    } else {
    }
    %c0 = arith.constant 0 : index
    %c0_1 = arith.constant 0 : index
    %3 = vector.load %arg12[%c0, %c0_1] : memref<16x32xf32, #tpu.memory_space<vmem>>, vector<16x32xf32>
    %c0_2 = arith.constant 0 : index
    %c0_3 = arith.constant 0 : index
    %4 = vector.load %arg3[%c0_2, %c0_3] : memref<16x32xf32, #tpu.memory_space<vmem>>, vector<16x32xf32>
    %c0_4 = arith.constant 0 : index
    %c0_5 = arith.constant 0 : index
    %c0_6 = arith.constant 0 : index
    %5 = vector.load %arg9[%c0_4, %c0_5, %c0_6] : memref<1x9x32xf32, #tpu.memory_space<vmem>>, vector<1x9x32xf32>
    %6 = vector.shape_cast %5 : vector<1x9x32xf32> to vector<9x32xf32>
    %c0_7 = arith.constant 0 : index
    %c0_8 = arith.constant 0 : index
    %c0_9 = arith.constant 0 : index
    %7 = vector.load %arg6[%c0_7, %c0_8, %c0_9] : memref<1x32x32xf32, #tpu.memory_space<vmem>>, vector<1x32x32xf32>
    %8 = vector.shape_cast %7 : vector<1x32x32xf32> to vector<32x32xf32>
    %9 = arith.addf %3, %4 : vector<16x32xf32>
    %c0_10 = arith.constant 0 : index
    %c0_11 = arith.constant 0 : index
    %c0_12 = arith.constant 0 : index
    %10 = vector.load %arg4[%c0_10, %c0_11, %c0_12] : memref<1x32x64xf32, #tpu.memory_space<vmem>>, vector<1x32x64xf32>
    %11 = vector.shape_cast %10 : vector<1x32x64xf32> to vector<32x64xf32>
    %cst = arith.constant dense<0.000000e+00> : vector<16x64xf32>
    %12 = tpu.matmul %9, %11, %cst {dimension_numbers = #tpu.dot_dimension_numbers<[1], [0], [0], [1], [0, 0, 1, 1], [], []>} : vector<16x32xf32>, vector<32x64xf32>, vector<16x64xf32> -> vector<16x64xf32>
    %c0_13 = arith.constant 0 : index
    %c0_14 = arith.constant 0 : index
    %c0_15 = arith.constant 0 : index
    %13 = vector.load %arg5[%c0_13, %c0_14, %c0_15] : memref<1x32x32xf32, #tpu.memory_space<vmem>>, vector<1x32x32xf32>
    %14 = vector.shape_cast %13 : vector<1x32x32xf32> to vector<32x32xf32>
    %cst_16 = arith.constant dense<0.000000e+00> : vector<16x32xf32>
    %15 = tpu.matmul %3, %14, %cst_16 {dimension_numbers = #tpu.dot_dimension_numbers<[1], [0], [0], [1], [0, 0, 1, 1], [], []>} : vector<16x32xf32>, vector<32x32xf32>, vector<16x32xf32> -> vector<16x32xf32>
    %16 = vector.extract_strided_slice %6 {offsets = [2, 0], sizes = [1, 32], strides = [1, 1]} : vector<9x32xf32> to vector<1x32xf32>
    %17 = vector.broadcast %16 : vector<1x32xf32> to vector<16x32xf32>
    %18 = arith.addf %15, %17 : vector<16x32xf32>
    %19 = vector.extract_strided_slice %12 {offsets = [0, 0], sizes = [16, 32], strides = [1, 1]} : vector<16x64xf32> to vector<16x32xf32>
    %20 = vector.extract_strided_slice %6 {offsets = [0, 0], sizes = [1, 32], strides = [1, 1]} : vector<9x32xf32> to vector<1x32xf32>
    %21 = vector.broadcast %20 : vector<1x32xf32> to vector<16x32xf32>
    %22 = arith.addf %19, %21 : vector<16x32xf32>
    %23 = vector.extract_strided_slice %12 {offsets = [0, 32], sizes = [16, 32], strides = [1, 1]} : vector<16x64xf32> to vector<16x32xf32>
    %24 = vector.extract_strided_slice %6 {offsets = [1, 0], sizes = [1, 32], strides = [1, 1]} : vector<9x32xf32> to vector<1x32xf32>
    %25 = vector.broadcast %24 : vector<1x32xf32> to vector<16x32xf32>
    %26 = arith.addf %23, %25 : vector<16x32xf32>
    %cst_17 = arith.constant 0.000000e+00 : f32
    %27 = vector.broadcast %cst_17 : f32 to vector<16x32xf32>
    %28 = vector.extract_strided_slice %22 {offsets = [0, 0], sizes = [16, 8], strides = [1, 1]} : vector<16x32xf32> to vector<16x8xf32>
    %29 = vector.shape_cast %28 : vector<16x8xf32> to vector<2x8x8xf32>
    %30 = vector.extract_strided_slice %26 {offsets = [0, 0], sizes = [16, 8], strides = [1, 1]} : vector<16x32xf32> to vector<16x8xf32>
    %31 = vector.shape_cast %30 : vector<16x8xf32> to vector<2x8x8xf32>
    %32 = vector.extract_strided_slice %18 {offsets = [0, 0], sizes = [16, 8], strides = [1, 1]} : vector<16x32xf32> to vector<16x8xf32>
    %33 = vector.shape_cast %32 : vector<16x8xf32> to vector<2x8x8xf32>
    "tpu.trace_start"() <{level = 10 : i32, message = "bqd,bkd->bqk"}> : () -> ()
    %cst_18 = arith.constant dense<0.000000e+00> : vector<2x8x8xf32>
    %34 = tpu.matmul %29, %31, %cst_18 {dimension_numbers = #tpu.dot_dimension_numbers<[2], [2], [1], [1], [0, 0, 0, 1, 1, 1], [0], [0]>} : vector<2x8x8xf32>, vector<2x8x8xf32>, vector<2x8x8xf32> -> vector<2x8x8xf32>
    "tpu.trace_stop"() : () -> ()
    %cst_19 = arith.constant dense<0xFF800000> : vector<2x8xf32>
    %35 = vector.multi_reduction <maximumf>, %34, %cst_19 [2] : vector<2x8x8xf32> to vector<2x8xf32>
    %36 = vector.shape_cast %35 : vector<2x8xf32> to vector<2x8x1xf32>
    %37 = vector.broadcast %36 : vector<2x8x1xf32> to vector<2x8x8xf32>
    %38 = arith.subf %34, %37 : vector<2x8x8xf32>
    %39 = math.exp %38 : vector<2x8x8xf32>
    %cst_20 = arith.constant dense<0.000000e+00> : vector<2x8xf32>
    %40 = vector.multi_reduction <add>, %39, %cst_20 [2] : vector<2x8x8xf32> to vector<2x8xf32>
    %41 = vector.shape_cast %40 : vector<2x8xf32> to vector<2x8x1xf32>
    %42 = tpu.reciprocal %41 : vector<2x8x1xf32> -> vector<2x8x1xf32>
    %43 = vector.broadcast %42 : vector<2x8x1xf32> to vector<2x8x8xf32>
    %44 = arith.mulf %39, %43 : vector<2x8x8xf32>
    "tpu.trace_start"() <{level = 10 : i32, message = "bqk,bkd->bqd"}> : () -> ()
    %cst_21 = arith.constant dense<0.000000e+00> : vector<2x8x8xf32>
    %45 = tpu.matmul %44, %33, %cst_21 {dimension_numbers = #tpu.dot_dimension_numbers<[2], [1], [1], [2], [0, 0, 0, 1, 1, 2], [0], [0]>} : vector<2x8x8xf32>, vector<2x8x8xf32>, vector<2x8x8xf32> -> vector<2x8x8xf32>
    "tpu.trace_stop"() : () -> ()
    %46 = vector.shape_cast %45 : vector<2x8x8xf32> to vector<16x8xf32>
    %47 = vector.extract_strided_slice %8 {offsets = [0, 0], sizes = [8, 32], strides = [1, 1]} : vector<32x32xf32> to vector<8x32xf32>
    %cst_22 = arith.constant dense<0.000000e+00> : vector<16x32xf32>
    %48 = tpu.matmul %46, %47, %cst_22 {dimension_numbers = #tpu.dot_dimension_numbers<[1], [0], [0], [1], [0, 0, 1, 1], [], []>} : vector<16x8xf32>, vector<8x32xf32>, vector<16x32xf32> -> vector<16x32xf32>
    %49 = arith.addf %27, %48 : vector<16x32xf32>
    %50 = vector.extract_strided_slice %22 {offsets = [0, 8], sizes = [16, 8], strides = [1, 1]} : vector<16x32xf32> to vector<16x8xf32>
    %51 = vector.shape_cast %50 : vector<16x8xf32> to vector<2x8x8xf32>
    %52 = vector.extract_strided_slice %26 {offsets = [0, 8], sizes = [16, 8], strides = [1, 1]} : vector<16x32xf32> to vector<16x8xf32>
    %53 = vector.shape_cast %52 : vector<16x8xf32> to vector<2x8x8xf32>
    %54 = vector.extract_strided_slice %18 {offsets = [0, 8], sizes = [16, 8], strides = [1, 1]} : vector<16x32xf32> to vector<16x8xf32>
    %55 = vector.shape_cast %54 : vector<16x8xf32> to vector<2x8x8xf32>
    "tpu.trace_start"() <{level = 10 : i32, message = "bqd,bkd->bqk"}> : () -> ()
    %cst_23 = arith.constant dense<0.000000e+00> : vector<2x8x8xf32>
    %56 = tpu.matmul %51, %53, %cst_23 {dimension_numbers = #tpu.dot_dimension_numbers<[2], [2], [1], [1], [0, 0, 0, 1, 1, 1], [0], [0]>} : vector<2x8x8xf32>, vector<2x8x8xf32>, vector<2x8x8xf32> -> vector<2x8x8xf32>
    "tpu.trace_stop"() : () -> ()
    %cst_24 = arith.constant dense<0xFF800000> : vector<2x8xf32>
    %57 = vector.multi_reduction <maximumf>, %56, %cst_24 [2] : vector<2x8x8xf32> to vector<2x8xf32>
    %58 = vector.shape_cast %57 : vector<2x8xf32> to vector<2x8x1xf32>
    %59 = vector.broadcast %58 : vector<2x8x1xf32> to vector<2x8x8xf32>
    %60 = arith.subf %56, %59 : vector<2x8x8xf32>
    %61 = math.exp %60 : vector<2x8x8xf32>
    %cst_25 = arith.constant dense<0.000000e+00> : vector<2x8xf32>
    %62 = vector.multi_reduction <add>, %61, %cst_25 [2] : vector<2x8x8xf32> to vector<2x8xf32>
    %63 = vector.shape_cast %62 : vector<2x8xf32> to vector<2x8x1xf32>
    %64 = tpu.reciprocal %63 : vector<2x8x1xf32> -> vector<2x8x1xf32>
    %65 = vector.broadcast %64 : vector<2x8x1xf32> to vector<2x8x8xf32>
    %66 = arith.mulf %61, %65 : vector<2x8x8xf32>
    "tpu.trace_start"() <{level = 10 : i32, message = "bqk,bkd->bqd"}> : () -> ()
    %cst_26 = arith.constant dense<0.000000e+00> : vector<2x8x8xf32>
    %67 = tpu.matmul %66, %55, %cst_26 {dimension_numbers = #tpu.dot_dimension_numbers<[2], [1], [1], [2], [0, 0, 0, 1, 1, 2], [0], [0]>} : vector<2x8x8xf32>, vector<2x8x8xf32>, vector<2x8x8xf32> -> vector<2x8x8xf32>
    "tpu.trace_stop"() : () -> ()
    %68 = vector.shape_cast %67 : vector<2x8x8xf32> to vector<16x8xf32>
    %69 = vector.extract_strided_slice %8 {offsets = [8, 0], sizes = [8, 32], strides = [1, 1]} : vector<32x32xf32> to vector<8x32xf32>
    %cst_27 = arith.constant dense<0.000000e+00> : vector<16x32xf32>
    %70 = tpu.matmul %68, %69, %cst_27 {dimension_numbers = #tpu.dot_dimension_numbers<[1], [0], [0], [1], [0, 0, 1, 1], [], []>} : vector<16x8xf32>, vector<8x32xf32>, vector<16x32xf32> -> vector<16x32xf32>
    %71 = arith.addf %49, %70 : vector<16x32xf32>
    %72 = vector.extract_strided_slice %22 {offsets = [0, 16], sizes = [16, 8], strides = [1, 1]} : vector<16x32xf32> to vector<16x8xf32>
    %73 = vector.shape_cast %72 : vector<16x8xf32> to vector<2x8x8xf32>
    %74 = vector.extract_strided_slice %26 {offsets = [0, 16], sizes = [16, 8], strides = [1, 1]} : vector<16x32xf32> to vector<16x8xf32>
    %75 = vector.shape_cast %74 : vector<16x8xf32> to vector<2x8x8xf32>
    %76 = vector.extract_strided_slice %18 {offsets = [0, 16], sizes = [16, 8], strides = [1, 1]} : vector<16x32xf32> to vector<16x8xf32>
    %77 = vector.shape_cast %76 : vector<16x8xf32> to vector<2x8x8xf32>
    "tpu.trace_start"() <{level = 10 : i32, message = "bqd,bkd->bqk"}> : () -> ()
    %cst_28 = arith.constant dense<0.000000e+00> : vector<2x8x8xf32>
    %78 = tpu.matmul %73, %75, %cst_28 {dimension_numbers = #tpu.dot_dimension_numbers<[2], [2], [1], [1], [0, 0, 0, 1, 1, 1], [0], [0]>} : vector<2x8x8xf32>, vector<2x8x8xf32>, vector<2x8x8xf32> -> vector<2x8x8xf32>
    "tpu.trace_stop"() : () -> ()
    %cst_29 = arith.constant dense<0xFF800000> : vector<2x8xf32>
    %79 = vector.multi_reduction <maximumf>, %78, %cst_29 [2] : vector<2x8x8xf32> to vector<2x8xf32>
    %80 = vector.shape_cast %79 : vector<2x8xf32> to vector<2x8x1xf32>
    %81 = vector.broadcast %80 : vector<2x8x1xf32> to vector<2x8x8xf32>
    %82 = arith.subf %78, %81 : vector<2x8x8xf32>
    %83 = math.exp %82 : vector<2x8x8xf32>
    %cst_30 = arith.constant dense<0.000000e+00> : vector<2x8xf32>
    %84 = vector.multi_reduction <add>, %83, %cst_30 [2] : vector<2x8x8xf32> to vector<2x8xf32>
    %85 = vector.shape_cast %84 : vector<2x8xf32> to vector<2x8x1xf32>
    %86 = tpu.reciprocal %85 : vector<2x8x1xf32> -> vector<2x8x1xf32>
    %87 = vector.broadcast %86 : vector<2x8x1xf32> to vector<2x8x8xf32>
    %88 = arith.mulf %83, %87 : vector<2x8x8xf32>
    "tpu.trace_start"() <{level = 10 : i32, message = "bqk,bkd->bqd"}> : () -> ()
    %cst_31 = arith.constant dense<0.000000e+00> : vector<2x8x8xf32>
    %89 = tpu.matmul %88, %77, %cst_31 {dimension_numbers = #tpu.dot_dimension_numbers<[2], [1], [1], [2], [0, 0, 0, 1, 1, 2], [0], [0]>} : vector<2x8x8xf32>, vector<2x8x8xf32>, vector<2x8x8xf32> -> vector<2x8x8xf32>
    "tpu.trace_stop"() : () -> ()
    %90 = vector.shape_cast %89 : vector<2x8x8xf32> to vector<16x8xf32>
    %91 = vector.extract_strided_slice %8 {offsets = [16, 0], sizes = [8, 32], strides = [1, 1]} : vector<32x32xf32> to vector<8x32xf32>
    %cst_32 = arith.constant dense<0.000000e+00> : vector<16x32xf32>
    %92 = tpu.matmul %90, %91, %cst_32 {dimension_numbers = #tpu.dot_dimension_numbers<[1], [0], [0], [1], [0, 0, 1, 1], [], []>} : vector<16x8xf32>, vector<8x32xf32>, vector<16x32xf32> -> vector<16x32xf32>
    %93 = arith.addf %71, %92 : vector<16x32xf32>
    %94 = vector.extract_strided_slice %22 {offsets = [0, 24], sizes = [16, 8], strides = [1, 1]} : vector<16x32xf32> to vector<16x8xf32>
    %95 = vector.shape_cast %94 : vector<16x8xf32> to vector<2x8x8xf32>
    %96 = vector.extract_strided_slice %26 {offsets = [0, 24], sizes = [16, 8], strides = [1, 1]} : vector<16x32xf32> to vector<16x8xf32>
    %97 = vector.shape_cast %96 : vector<16x8xf32> to vector<2x8x8xf32>
    %98 = vector.extract_strided_slice %18 {offsets = [0, 24], sizes = [16, 8], strides = [1, 1]} : vector<16x32xf32> to vector<16x8xf32>
    %99 = vector.shape_cast %98 : vector<16x8xf32> to vector<2x8x8xf32>
    "tpu.trace_start"() <{level = 10 : i32, message = "bqd,bkd->bqk"}> : () -> ()
    %cst_33 = arith.constant dense<0.000000e+00> : vector<2x8x8xf32>
    %100 = tpu.matmul %95, %97, %cst_33 {dimension_numbers = #tpu.dot_dimension_numbers<[2], [2], [1], [1], [0, 0, 0, 1, 1, 1], [0], [0]>} : vector<2x8x8xf32>, vector<2x8x8xf32>, vector<2x8x8xf32> -> vector<2x8x8xf32>
    "tpu.trace_stop"() : () -> ()
    %cst_34 = arith.constant dense<0xFF800000> : vector<2x8xf32>
    %101 = vector.multi_reduction <maximumf>, %100, %cst_34 [2] : vector<2x8x8xf32> to vector<2x8xf32>
    %102 = vector.shape_cast %101 : vector<2x8xf32> to vector<2x8x1xf32>
    %103 = vector.broadcast %102 : vector<2x8x1xf32> to vector<2x8x8xf32>
    %104 = arith.subf %100, %103 : vector<2x8x8xf32>
    %105 = math.exp %104 : vector<2x8x8xf32>
    %cst_35 = arith.constant dense<0.000000e+00> : vector<2x8xf32>
    %106 = vector.multi_reduction <add>, %105, %cst_35 [2] : vector<2x8x8xf32> to vector<2x8xf32>
    %107 = vector.shape_cast %106 : vector<2x8xf32> to vector<2x8x1xf32>
    %108 = tpu.reciprocal %107 : vector<2x8x1xf32> -> vector<2x8x1xf32>
    %109 = vector.broadcast %108 : vector<2x8x1xf32> to vector<2x8x8xf32>
    %110 = arith.mulf %105, %109 : vector<2x8x8xf32>
    "tpu.trace_start"() <{level = 10 : i32, message = "bqk,bkd->bqd"}> : () -> ()
    %cst_36 = arith.constant dense<0.000000e+00> : vector<2x8x8xf32>
    %111 = tpu.matmul %110, %99, %cst_36 {dimension_numbers = #tpu.dot_dimension_numbers<[2], [1], [1], [2], [0, 0, 0, 1, 1, 2], [0], [0]>} : vector<2x8x8xf32>, vector<2x8x8xf32>, vector<2x8x8xf32> -> vector<2x8x8xf32>
    "tpu.trace_stop"() : () -> ()
    %112 = vector.shape_cast %111 : vector<2x8x8xf32> to vector<16x8xf32>
    %113 = vector.extract_strided_slice %8 {offsets = [24, 0], sizes = [8, 32], strides = [1, 1]} : vector<32x32xf32> to vector<8x32xf32>
    %cst_37 = arith.constant dense<0.000000e+00> : vector<16x32xf32>
    %114 = tpu.matmul %112, %113, %cst_37 {dimension_numbers = #tpu.dot_dimension_numbers<[1], [0], [0], [1], [0, 0, 1, 1], [], []>} : vector<16x8xf32>, vector<8x32xf32>, vector<16x32xf32> -> vector<16x32xf32>
    %115 = arith.addf %93, %114 : vector<16x32xf32>
    %116 = vector.extract_strided_slice %6 {offsets = [3, 0], sizes = [1, 32], strides = [1, 1]} : vector<9x32xf32> to vector<1x32xf32>
    %117 = vector.broadcast %116 : vector<1x32xf32> to vector<16x32xf32>
    %118 = arith.addf %115, %117 : vector<16x32xf32>
    %119 = arith.addf %3, %118 : vector<16x32xf32>
    %cst_38 = arith.constant dense<0.000000e+00> : vector<16xf32>
    %120 = vector.multi_reduction <add>, %119, %cst_38 [1] : vector<16x32xf32> to vector<16xf32>
    %121 = vector.shape_cast %120 : vector<16xf32> to vector<16x1xf32>
    %cst_39 = arith.constant 3.200000e+01 : f32
    %122 = vector.broadcast %cst_39 : f32 to vector<16x1xf32>
    %123 = arith.divf %121, %122 : vector<16x1xf32>
    %124 = vector.broadcast %123 : vector<16x1xf32> to vector<16x32xf32>
    %125 = arith.subf %119, %124 : vector<16x32xf32>
    %126 = arith.mulf %125, %125 : vector<16x32xf32>
    %cst_40 = arith.constant dense<0.000000e+00> : vector<16xf32>
    %127 = vector.multi_reduction <add>, %126, %cst_40 [1] : vector<16x32xf32> to vector<16xf32>
    %128 = vector.shape_cast %127 : vector<16xf32> to vector<16x1xf32>
    %cst_41 = arith.constant 3.200000e+01 : f32
    %129 = vector.broadcast %cst_41 : f32 to vector<16x1xf32>
    %130 = arith.divf %128, %129 : vector<16x1xf32>
    %cst_42 = arith.constant 9.99999974E-6 : f32
    %131 = vector.broadcast %cst_42 : f32 to vector<16x1xf32>
    %132 = arith.addf %130, %131 : vector<16x1xf32>
    %133 = math.rsqrt %132 : vector<16x1xf32>
    %134 = vector.broadcast %133 : vector<16x1xf32> to vector<16x32xf32>
    %135 = arith.mulf %125, %134 : vector<16x32xf32>
    %136 = vector.extract_strided_slice %6 {offsets = [4, 0], sizes = [1, 32], strides = [1, 1]} : vector<9x32xf32> to vector<1x32xf32>
    %137 = vector.broadcast %136 : vector<1x32xf32> to vector<16x32xf32>
    %138 = arith.mulf %135, %137 : vector<16x32xf32>
    %139 = vector.extract_strided_slice %6 {offsets = [5, 0], sizes = [1, 32], strides = [1, 1]} : vector<9x32xf32> to vector<1x32xf32>
    %140 = vector.broadcast %139 : vector<1x32xf32> to vector<16x32xf32>
    %141 = arith.addf %138, %140 : vector<16x32xf32>
    %c0_43 = arith.constant 0 : index
    %c0_44 = arith.constant 0 : index
    %c0_45 = arith.constant 0 : index
    %142 = vector.load %arg7[%c0_43, %c0_44, %c0_45] : memref<1x32x64xf32, #tpu.memory_space<vmem>>, vector<1x32x64xf32>
    %143 = vector.shape_cast %142 : vector<1x32x64xf32> to vector<32x64xf32>
    %cst_46 = arith.constant dense<0.000000e+00> : vector<16x64xf32>
    %144 = tpu.matmul %141, %143, %cst_46 {dimension_numbers = #tpu.dot_dimension_numbers<[1], [0], [0], [1], [0, 0, 1, 1], [], []>} : vector<16x32xf32>, vector<32x64xf32>, vector<16x64xf32> -> vector<16x64xf32>
    %c0_47 = arith.constant 0 : index
    %c0_48 = arith.constant 0 : index
    %c0_49 = arith.constant 0 : index
    %145 = vector.load %arg10[%c0_47, %c0_48, %c0_49] : memref<1x1x64xf32, #tpu.memory_space<vmem>>, vector<1x1x64xf32>
    %146 = vector.shape_cast %145 : vector<1x1x64xf32> to vector<1x64xf32>
    %147 = vector.broadcast %146 : vector<1x64xf32> to vector<16x64xf32>
    %148 = arith.addf %144, %147 : vector<16x64xf32>
    %cst_50 = arith.constant 0.000000e+00 : f32
    %149 = vector.broadcast %cst_50 : f32 to vector<16x64xf32>
    %150 = arith.maximumf %148, %149 : vector<16x64xf32>
    %c0_51 = arith.constant 0 : index
    %c0_52 = arith.constant 0 : index
    %c0_53 = arith.constant 0 : index
    %151 = vector.load %arg8[%c0_51, %c0_52, %c0_53] : memref<1x64x32xf32, #tpu.memory_space<vmem>>, vector<1x64x32xf32>
    %152 = vector.shape_cast %151 : vector<1x64x32xf32> to vector<64x32xf32>
    %cst_54 = arith.constant dense<0.000000e+00> : vector<16x32xf32>
    %153 = tpu.matmul %150, %152, %cst_54 {dimension_numbers = #tpu.dot_dimension_numbers<[1], [0], [0], [1], [0, 0, 1, 1], [], []>} : vector<16x64xf32>, vector<64x32xf32>, vector<16x32xf32> -> vector<16x32xf32>
    %154 = vector.extract_strided_slice %6 {offsets = [8, 0], sizes = [1, 32], strides = [1, 1]} : vector<9x32xf32> to vector<1x32xf32>
    %155 = vector.broadcast %154 : vector<1x32xf32> to vector<16x32xf32>
    %156 = arith.addf %153, %155 : vector<16x32xf32>
    %157 = arith.addf %141, %156 : vector<16x32xf32>
    %cst_55 = arith.constant dense<0.000000e+00> : vector<16xf32>
    %158 = vector.multi_reduction <add>, %157, %cst_55 [1] : vector<16x32xf32> to vector<16xf32>
    %159 = vector.shape_cast %158 : vector<16xf32> to vector<16x1xf32>
    %cst_56 = arith.constant 3.200000e+01 : f32
    %160 = vector.broadcast %cst_56 : f32 to vector<16x1xf32>
    %161 = arith.divf %159, %160 : vector<16x1xf32>
    %162 = vector.broadcast %161 : vector<16x1xf32> to vector<16x32xf32>
    %163 = arith.subf %157, %162 : vector<16x32xf32>
    %164 = arith.mulf %163, %163 : vector<16x32xf32>
    %cst_57 = arith.constant dense<0.000000e+00> : vector<16xf32>
    %165 = vector.multi_reduction <add>, %164, %cst_57 [1] : vector<16x32xf32> to vector<16xf32>
    %166 = vector.shape_cast %165 : vector<16xf32> to vector<16x1xf32>
    %cst_58 = arith.constant 3.200000e+01 : f32
    %167 = vector.broadcast %cst_58 : f32 to vector<16x1xf32>
    %168 = arith.divf %166, %167 : vector<16x1xf32>
    %cst_59 = arith.constant 9.99999974E-6 : f32
    %169 = vector.broadcast %cst_59 : f32 to vector<16x1xf32>
    %170 = arith.addf %168, %169 : vector<16x1xf32>
    %171 = math.rsqrt %170 : vector<16x1xf32>
    %172 = vector.broadcast %171 : vector<16x1xf32> to vector<16x32xf32>
    %173 = arith.mulf %163, %172 : vector<16x32xf32>
    %174 = vector.extract_strided_slice %6 {offsets = [6, 0], sizes = [1, 32], strides = [1, 1]} : vector<9x32xf32> to vector<1x32xf32>
    %175 = vector.broadcast %174 : vector<1x32xf32> to vector<16x32xf32>
    %176 = arith.mulf %173, %175 : vector<16x32xf32>
    %177 = vector.extract_strided_slice %6 {offsets = [7, 0], sizes = [1, 32], strides = [1, 1]} : vector<9x32xf32> to vector<1x32xf32>
    %178 = vector.broadcast %177 : vector<1x32xf32> to vector<16x32xf32>
    %179 = arith.addf %176, %178 : vector<16x32xf32>
    %c0_60 = arith.constant 0 : index
    %c0_61 = arith.constant 0 : index
    %180 = vector.load %arg12[%c0_60, %c0_61] : memref<16x32xf32, #tpu.memory_space<vmem>>, vector<16x32xf32>
    tpu.vector_store %arg12[%c0_60, %c0_61], %179 {strides = array<i32>} : memref<16x32xf32, #tpu.memory_space<vmem>>, vector<16x32xf32>,
    %c1_i32 = arith.constant 1 : i32
    %181 = arith.cmpi eq, %arg1, %c1_i32 : i32
    %182 = arith.extui %181 : i1 to i32
    %c0_i32_62 = arith.constant 0 : i32
    %183 = arith.cmpi ne, %182, %c0_i32_62 : i32
    scf.if %183 {
      %c0_63 = arith.constant 0 : index
      %c0_64 = arith.constant 0 : index
      %184 = vector.load %arg11[%c0_63, %c0_64] : memref<16x32xf32, #tpu.memory_space<vmem>>, vector<16x32xf32>
      tpu.vector_store %arg11[%c0_63, %c0_64], %179 {strides = array<i32>} : memref<16x32xf32, #tpu.memory_space<vmem>>, vector<16x32xf32>,
    } else {
    }
    return
  }
  func.func @transform_0(%arg0: i32, %arg1: i32) -> (i32, i32) {
    %c0_i32 = arith.constant 0 : i32
    %c0_i32_0 = arith.constant 0 : i32
    return %arg0, %c0_i32 : i32, i32
  }
  func.func @transform_1(%arg0: i32, %arg1: i32) -> (i32, i32) {
    %c0_i32 = arith.constant 0 : i32
    %c0_i32_0 = arith.constant 0 : i32
    return %arg0, %c0_i32 : i32, i32
  }
  func.func @transform_2(%arg0: i32, %arg1: i32) -> (i32, i32, i32) {
    %c0_i32 = arith.constant 0 : i32
    %c0_i32_0 = arith.constant 0 : i32
    %c0_i32_1 = arith.constant 0 : i32
    return %arg1, %c0_i32, %c0_i32_0 : i32, i32, i32
  }
  func.func @transform_3(%arg0: i32, %arg1: i32) -> (i32, i32, i32) {
    %c0_i32 = arith.constant 0 : i32
    %c0_i32_0 = arith.constant 0 : i32
    %c0_i32_1 = arith.constant 0 : i32
    return %arg1, %c0_i32, %c0_i32_0 : i32, i32, i32
  }
  func.func @transform_4(%arg0: i32, %arg1: i32) -> (i32, i32, i32) {
    %c0_i32 = arith.constant 0 : i32
    %c0_i32_0 = arith.constant 0 : i32
    %c0_i32_1 = arith.constant 0 : i32
    return %arg1, %c0_i32, %c0_i32_0 : i32, i32, i32
  }
  func.func @transform_5(%arg0: i32, %arg1: i32) -> (i32, i32, i32) {
    %c0_i32 = arith.constant 0 : i32
    %c0_i32_0 = arith.constant 0 : i32
    %c0_i32_1 = arith.constant 0 : i32
    return %arg1, %c0_i32, %c0_i32_0 : i32, i32, i32
  }
  func.func @transform_6(%arg0: i32, %arg1: i32) -> (i32, i32, i32) {
    %c0_i32 = arith.constant 0 : i32
    %c0_i32_0 = arith.constant 0 : i32
    %c0_i32_1 = arith.constant 0 : i32
    return %arg1, %c0_i32, %c0_i32_0 : i32, i32, i32
  }
  func.func @transform_7(%arg0: i32, %arg1: i32) -> (i32, i32, i32) {
    %c0_i32 = arith.constant 0 : i32
    %c0_i32_0 = arith.constant 0 : i32
    %c0_i32_1 = arith.constant 0 : i32
    return %arg1, %c0_i32, %c0_i32_0 : i32, i32, i32
  }
  func.func @transform_8(%arg0: i32, %arg1: i32) -> (i32, i32, i32) {
    %c0_i32 = arith.constant 0 : i32
    %c0_i32_0 = arith.constant 0 : i32
    %c0_i32_1 = arith.constant 0 : i32
    return %arg1, %c0_i32, %c0_i32_0 : i32, i32, i32
  }
  func.func @transform_9(%arg0: i32, %arg1: i32) -> (i32, i32) {
    %c0_i32 = arith.constant 0 : i32
    %c0_i32_0 = arith.constant 0 : i32
    return %arg0, %c0_i32 : i32, i32
  }
}

</mosaic_0001>

<llo_original>
// kernel: tpu_custom_call.1
$region0: #{tpu_custom_call.1}
  #allocation0 [shape = 'u32[]', space=smem, size = 0x4, offset = 0x4, fixed_abs, tag = 'smem constant byte address 0x4 - core index']
  #allocation1 [shape = 'u32[72,128]{1,0:T(1,128)}', space=vmem, size = 0x9000, scoped, tag = 'internal scratch']
  #allocation2 [shape = 'f32[16,32]{1,0:T(8,128)}', space=vmem, size = 0x2000, scoped, tag = 'scratch operand']
  %s0 = inlined_call_operand.vmem [shape: f32[16,32], index: 0, kind: input, shape index: {}]
  %s1 = inlined_call_operand.vmem [shape: f32[16,32], index: 1, kind: input, shape index: {}]
  %s2 = inlined_call_operand.vmem [shape: f32[2,32,64], index: 2, kind: input, shape index: {}]
  %s3 = inlined_call_operand.vmem [shape: f32[2,32,32], index: 3, kind: input, shape index: {}]
  %s4 = inlined_call_operand.vmem [shape: f32[2,32,32], index: 4, kind: input, shape index: {}]
  %s5 = inlined_call_operand.hbm [shape: f32[2,32,64], index: 5, kind: input, shape index: {}]
  %s6 = inlined_call_operand.vmem [shape: f32[2,64,32], index: 6, kind: input, shape index: {}]
  %s7 = inlined_call_operand.vmem [shape: f32[2,9,32], index: 7, kind: input, shape index: {}]
  %s8 = inlined_call_operand.vmem [shape: f32[2,1,64], index: 8, kind: input, shape index: {}]
  %s9 = inlined_call_operand.hbm [shape: f32[16,32], index: 9, kind: output, shape index: {}]
  %s10 = sld [smem:[#allocation0]]
  $region81: #{tpu_custom_call.1} parent=0
    _
  %s12 = ssub.s32 1, %s10
  %s13 = scalar_select 0, %s12, %s10
  $region1: #{tpu_custom_call.1} parent=0
    #allocation3 [shape = 'u8[32768]{0}', space=vmem, size = 0x8000, scoped, tag = 'input window, operand 5']
    #allocation4 [shape = 's32[2]{0}', space=sflag, size = 0x8, scoped, tag = 'scoped memory for tpu_custom_call.1']
    #allocation5 [shape = 's32[2]{0}', space=sflag, size = 0x8, scoped, tag = 'scoped memory for tpu_custom_call.1']
    #allocation6 [shape = 'u8[8192]{0}', space=vmem, size = 0x2000, scoped, tag = 'output window, operand 0, single buffered']
    %14 = vsyncpa [#allocation4], 0
    %s15 = scalar_lea.sflag [#allocation4], 1
    %16 = vsyncpa %s15, 0
    %17 = vsyncpa [#allocation5], 0
    loop: start=0, step=1, limit=4
    $region2: #{tpu_custom_call.1} parent=1 // loop_pre_header
      _
    $region3: #{tpu_custom_call.1} parent=1 // loop_header
      %s19 = sphi 0, %s23
      %p20 = scmp.ge.s32.totalorder %s19, 4
      %s26 = sphi 0, %s38
      %s27 = sphi 0, %s34
      %s28 = sphi 0, %s26
      %s29 = sphi 0, %s27
      %s30 = sphi 0, %s28
      %s31 = sphi 0, %s29
      %s41 = sphi 0, %s43
      %s44 = sphi 0, %s41
      %s45 = sphi 0, %s44
      %s61 = sphi 0, %s45
      %s67 = sphi 0, %s69
      %s70 = sphi 0, %s67
      %s71 = sphi 0, %s70
      %s87 = sphi 0, %s71
      %s93 = sphi 0, %s95
      %s96 = sphi 0, %s93
      %s97 = sphi 0, %s96
      %s113 = sphi 0, %s97
      %s119 = sphi 0, %s121
      %s122 = sphi 0, %s119
      %s123 = sphi 0, %s122
      %s139 = sphi 0, %s123
      %s145 = sphi 0, %s147
      %s148 = sphi 0, %s145
      %s149 = sphi 0, %s148
      %s165 = sphi 0, %s149
      %s171 = sphi 0, %s173
      %s174 = sphi 0, %s171
      %s175 = sphi 0, %s174
      %s191 = sphi 0, %s175
      %s197 = sphi 0, %s199
      %s200 = sphi 0, %s197
      %s201 = sphi 0, %s200
      %s217 = sphi 0, %s201
      %s223 = sphi 0, %s225
      %s226 = sphi 0, %s223
      %s227 = sphi 0, %s226
      %s243 = sphi 0, %s227
      %s249 = sphi 0, %s251
      %s252 = sphi 0, %s249
      %s253 = sphi 0, %s252
      %s269 = sphi 0, %s253
      %s275 = sphi 0, %s277
      %s278 = sphi 0, %s275
      %s279 = sphi 0, %s278
      %s295 = sphi 0, %s279
    $region4: #{tpu_custom_call.1} parent=1 // loop_header_branch
      %22 = sbr.rel (%p20) target = $region8
    $region5: #{tpu_custom_call.1} parent=1 // loop_body
      %s24 = ssub.s32 %s19, 1
      %s25 = ssub.s32 %s19, 2
      %s32 = sadd.s32 1, %s27
      %p33 = scmp.ge.s32.totalorder %s32, 2
      %s34 = scalar_select %p33, 0, %s32
      %s35 = sadd.s32 1, %s26
      %s36 = scalar_select %p33, %s35, %s26
      %p37 = scmp.ge.s32.totalorder %s36, 1
      %s38 = scalar_select %p37, 0, %s36
      %s39 = ssub.s32 %s26, %s38
      %p40 = scmp.eq.s32.totalorder %s39, 0
      %s42 = sadd.s32 %s41, 1
      %s43 = scalar_select %p40, %s41, %s42
      %p46 = pneg %p40
      %p47 = scmp.eq.s32.totalorder %s19, 1
      %p48 = por %p46, %p47
      %p49 = scmp.ne.s32.totalorder %s41, %s44
      %p50 = scmp.eq.s32.totalorder %s19, 0
      %p51 = por %p49, %p50
      %p52 = scmp.ne.s32.totalorder %s41, %s44
      %p53 = scmp.eq.s32.totalorder %s24, 1
      %p54 = por %p52, %p53
      %p55 = scmp.ne.s32.totalorder %s44, %s45
      %p56 = scmp.eq.s32.totalorder %s24, 0
      %p57 = por %p55, %p56
      %p58 = scmp.ne.s32.totalorder %s44, %s45
      %p59 = scmp.eq.s32.totalorder %s25, 1
      %p60 = por %p58, %p59
      %p62 = scmp.ne.s32.totalorder %s45, %s61
      %p63 = scmp.eq.s32.totalorder %s25, 0
      %p64 = por %p62, %p63
      %s65 = ssub.s32 %s26, %s38
      %p66 = scmp.eq.s32.totalorder %s65, 0
      %s68 = sadd.s32 %s67, 1
      %s69 = scalar_select %p66, %s67, %s68
      %p72 = pneg %p66
      %p73 = scmp.eq.s32.totalorder %s19, 1
      %p74 = por %p72, %p73
      %p75 = scmp.ne.s32.totalorder %s67, %s70
      %p76 = scmp.eq.s32.totalorder %s19, 0
      %p77 = por %p75, %p76
      %p78 = scmp.ne.s32.totalorder %s67, %s70
      %p79 = scmp.eq.s32.totalorder %s24, 1
      %p80 = por %p78, %p79
      %p81 = scmp.ne.s32.totalorder %s70, %s71
      %p82 = scmp.eq.s32.totalorder %s24, 0
      %p83 = por %p81, %p82
      %p84 = scmp.ne.s32.totalorder %s70, %s71
      %p85 = scmp.eq.s32.totalorder %s25, 1
      %p86 = por %p84, %p85
      %p88 = scmp.ne.s32.totalorder %s71, %s87
      %p89 = scmp.eq.s32.totalorder %s25, 0
      %p90 = por %p88, %p89
      %s91 = ssub.s32 %s27, %s34
      %p92 = scmp.eq.s32.totalorder %s91, 0
      %s94 = sadd.s32 %s93, 1
      %s95 = scalar_select %p92, %s93, %s94
      %p98 = pneg %p92
      %p99 = scmp.eq.s32.totalorder %s19, 1
      %p100 = por %p98, %p99
      %p101 = scmp.ne.s32.totalorder %s93, %s96
      %p102 = scmp.eq.s32.totalorder %s19, 0
      %p103 = por %p101, %p102
      %p104 = scmp.ne.s32.totalorder %s93, %s96
      %p105 = scmp.eq.s32.totalorder %s24, 1
      %p106 = por %p104, %p105
      %p107 = scmp.ne.s32.totalorder %s96, %s97
      %p108 = scmp.eq.s32.totalorder %s24, 0
      %p109 = por %p107, %p108
      %p110 = scmp.ne.s32.totalorder %s96, %s97
      %p111 = scmp.eq.s32.totalorder %s25, 1
      %p112 = por %p110, %p111
      %p114 = scmp.ne.s32.totalorder %s97, %s113
      %p115 = scmp.eq.s32.totalorder %s25, 0
      %p116 = por %p114, %p115
      %s117 = ssub.s32 %s27, %s34
      %p118 = scmp.eq.s32.totalorder %s117, 0
      %s120 = sadd.s32 %s119, 1
      %s121 = scalar_select %p118, %s119, %s120
      %p124 = pneg %p118
      %p125 = scmp.eq.s32.totalorder %s19, 1
      %p126 = por %p124, %p125
      %p127 = scmp.ne.s32.totalorder %s119, %s122
      %p128 = scmp.eq.s32.totalorder %s19, 0
      %p129 = por %p127, %p128
      %p130 = scmp.ne.s32.totalorder %s119, %s122
      %p131 = scmp.eq.s32.totalorder %s24, 1
      %p132 = por %p130, %p131
      %p133 = scmp.ne.s32.totalorder %s122, %s123
      %p134 = scmp.eq.s32.totalorder %s24, 0
      %p135 = por %p133, %p134
      %p136 = scmp.ne.s32.totalorder %s122, %s123
      %p137 = scmp.eq.s32.totalorder %s25, 1
      %p138 = por %p136, %p137
      %p140 = scmp.ne.s32.totalorder %s123, %s139
      %p141 = scmp.eq.s32.totalorder %s25, 0
      %p142 = por %p140, %p141
      %s143 = ssub.s32 %s27, %s34
      %p144 = scmp.eq.s32.totalorder %s143, 0
      %s146 = sadd.s32 %s145, 1
      %s147 = scalar_select %p144, %s145, %s146
      %p150 = pneg %p144
      %p151 = scmp.eq.s32.totalorder %s19, 1
      %p152 = por %p150, %p151
      %p153 = scmp.ne.s32.totalorder %s145, %s148
      %p154 = scmp.eq.s32.totalorder %s19, 0
      %p155 = por %p153, %p154
      %p156 = scmp.ne.s32.totalorder %s145, %s148
      %p157 = scmp.eq.s32.totalorder %s24, 1
      %p158 = por %p156, %p157
      %p159 = scmp.ne.s32.totalorder %s148, %s149
      %p160 = scmp.eq.s32.totalorder %s24, 0
      %p161 = por %p159, %p160
      %p162 = scmp.ne.s32.totalorder %s148, %s149
      %p163 = scmp.eq.s32.totalorder %s25, 1
      %p164 = por %p162, %p163
      %p166 = scmp.ne.s32.totalorder %s149, %s165
      %p167 = scmp.eq.s32.totalorder %s25, 0
      %p168 = por %p166, %p167
      %s169 = ssub.s32 %s27, %s34
      %p170 = scmp.eq.s32.totalorder %s169, 0
      %s172 = sadd.s32 %s171, 1
      %s173 = scalar_select %p170, %s171, %s172
      %p176 = pneg %p170
      %p177 = scmp.eq.s32.totalorder %s19, 1
      %p178 = por %p176, %p177
      %p179 = scmp.ne.s32.totalorder %s171, %s174
      %p180 = scmp.eq.s32.totalorder %s19, 0
      %p181 = por %p179, %p180
      %p182 = scmp.ne.s32.totalorder %s171, %s174
      %p183 = scmp.eq.s32.totalorder %s24, 1
      %p184 = por %p182, %p183
      %p185 = scmp.ne.s32.totalorder %s174, %s175
      %p186 = scmp.eq.s32.totalorder %s24, 0
      %p187 = por %p185, %p186
      %p188 = scmp.ne.s32.totalorder %s174, %s175
      %p189 = scmp.eq.s32.totalorder %s25, 1
      %p190 = por %p188, %p189
      %p192 = scmp.ne.s32.totalorder %s175, %s191
      %p193 = scmp.eq.s32.totalorder %s25, 0
      %p194 = por %p192, %p193
      %s195 = ssub.s32 %s27, %s34
      %p196 = scmp.eq.s32.totalorder %s195, 0
      %s198 = sadd.s32 %s197, 1
      %s199 = scalar_select %p196, %s197, %s198
      %p202 = pneg %p196
      %p203 = scmp.eq.s32.totalorder %s19, 1
      %p204 = por %p202, %p203
      %p205 = scmp.ne.s32.totalorder %s197, %s200
      %p206 = scmp.eq.s32.totalorder %s19, 0
      %p207 = por %p205, %p206
      %p208 = scmp.ne.s32.totalorder %s197, %s200
      %p209 = scmp.eq.s32.totalorder %s24, 1
      %p210 = por %p208, %p209
      %p211 = scmp.ne.s32.totalorder %s200, %s201
      %p212 = scmp.eq.s32.totalorder %s24, 0
      %p213 = por %p211, %p212
      %p214 = scmp.ne.s32.totalorder %s200, %s201
      %p215 = scmp.eq.s32.totalorder %s25, 1
      %p216 = por %p214, %p215
      %p218 = scmp.ne.s32.totalorder %s201, %s217
      %p219 = scmp.eq.s32.totalorder %s25, 0
      %p220 = por %p218, %p219
      %s221 = ssub.s32 %s27, %s34
      %p222 = scmp.eq.s32.totalorder %s221, 0
      %s224 = sadd.s32 %s223, 1
      %s225 = scalar_select %p222, %s223, %s224
      %p228 = pneg %p222
      %p229 = scmp.eq.s32.totalorder %s19, 1
      %p230 = por %p228, %p229
      %p231 = scmp.ne.s32.totalorder %s223, %s226
      %p232 = scmp.eq.s32.totalorder %s19, 0
      %p233 = por %p231, %p232
      %p234 = scmp.ne.s32.totalorder %s223, %s226
      %p235 = scmp.eq.s32.totalorder %s24, 1
      %p236 = por %p234, %p235
      %p237 = scmp.ne.s32.totalorder %s226, %s227
      %p238 = scmp.eq.s32.totalorder %s24, 0
      %p239 = por %p237, %p238
      %p240 = scmp.ne.s32.totalorder %s226, %s227
      %p241 = scmp.eq.s32.totalorder %s25, 1
      %p242 = por %p240, %p241
      %p244 = scmp.ne.s32.totalorder %s227, %s243
      %p245 = scmp.eq.s32.totalorder %s25, 0
      %p246 = por %p244, %p245
      %s247 = ssub.s32 %s27, %s34
      %p248 = scmp.eq.s32.totalorder %s247, 0
      %s250 = sadd.s32 %s249, 1
      %s251 = scalar_select %p248, %s249, %s250
      %p254 = pneg %p248
      %p255 = scmp.eq.s32.totalorder %s19, 1
      %p256 = por %p254, %p255
      %p257 = scmp.ne.s32.totalorder %s249, %s252
      %p258 = scmp.eq.s32.totalorder %s19, 0
      %p259 = por %p257, %p258
      %p260 = scmp.ne.s32.totalorder %s249, %s252
      %p261 = scmp.eq.s32.totalorder %s24, 1
      %p262 = por %p260, %p261
      %p263 = scmp.ne.s32.totalorder %s252, %s253
      %p264 = scmp.eq.s32.totalorder %s24, 0
      %p265 = por %p263, %p264
      %p266 = scmp.ne.s32.totalorder %s252, %s253
      %p267 = scmp.eq.s32.totalorder %s25, 1
      %p268 = por %p266, %p267
      %p270 = scmp.ne.s32.totalorder %s253, %s269
      %p271 = scmp.eq.s32.totalorder %s25, 0
      %p272 = por %p270, %p271
      %s273 = ssub.s32 %s26, %s38
      %p274 = scmp.eq.s32.totalorder %s273, 0
      %s276 = sadd.s32 %s275, 1
      %s277 = scalar_select %p274, %s275, %s276
      %p280 = pneg %p274
      %p281 = scmp.eq.s32.totalorder %s19, 1
      %p282 = por %p280, %p281
      %p283 = scmp.ne.s32.totalorder %s275, %s278
      %p284 = scmp.eq.s32.totalorder %s19, 0
      %p285 = por %p283, %p284
      %p286 = scmp.ne.s32.totalorder %s275, %s278
      %p287 = scmp.eq.s32.totalorder %s24, 1
      %p288 = por %p286, %p287
      %p289 = scmp.ne.s32.totalorder %s278, %s279
      %p290 = scmp.eq.s32.totalorder %s24, 0
      %p291 = por %p289, %p290
      %p292 = scmp.ne.s32.totalorder %s278, %s279
      %p293 = scmp.eq.s32.totalorder %s25, 1
      %p294 = por %p292, %p293
      %p296 = scmp.ne.s32.totalorder %s279, %s295
      %p297 = scmp.eq.s32.totalorder %s25, 0
      %p298 = por %p296, %p297
      %p299 = scmp.le.s32.totalorder 1, %s19
      %p300 = scmp.lt.s32.totalorder %s19, 3
      %p301 = pnand %p299, %p300
      %p302 = pneg %p301
      // Predicated region
      $region9: #{tpu_custom_call.1} parent=5 // pred_check
        _
      $region10: #{tpu_custom_call.1} parent=5 // pred_check_branch
        %304 = sbr.rel (%p301) target = $region12
      $region11: #{tpu_custom_call.1} parent=5 // pred_region
        %s305 = ssub.s32 %s19, 1
        // Predicated region
        $region13: #{tpu_custom_call.1} parent=11 // pred_check
          %p306 = pneg %p57
        $region14: #{tpu_custom_call.1} parent=11 // pred_check_branch
          %308 = sbr.rel (%p306) target = $region16
        $region15: #{tpu_custom_call.1} parent=11 // pred_region
          %s309 = smul.u32 2, %s28
          %p310 = scmp.lt.s32.totalorder %s309, 1
          %s311 = scalar_select %p310, %s309, 1
          %s312 = smul.addr %s311, 8
          %s313 = scalar_lea.vmem %s0, %s312
          %s314 = smul.u32 2, %s28
        $region16: #{tpu_custom_call.1} parent=11 // pred_fallthru
          _
        // Predicated region
        $region17: #{tpu_custom_call.1} parent=11 // pred_check
          %p315 = pneg %p83
        $region18: #{tpu_custom_call.1} parent=11 // pred_check_branch
          %317 = sbr.rel (%p315) target = $region20
        $region19: #{tpu_custom_call.1} parent=11 // pred_region
          %s318 = smul.u32 2, %s28
          %p319 = scmp.lt.s32.totalorder %s318, 1
          %s320 = scalar_select %p319, %s318, 1
          %s321 = smul.addr %s320, 8
          %s322 = scalar_lea.vmem %s1, %s321
          %s323 = smul.u32 2, %s28
        $region20: #{tpu_custom_call.1} parent=11 // pred_fallthru
          _
      $region12: #{tpu_custom_call.1} parent=5 // pred_fallthru
        _
      %p324 = scmp.lt.s32.totalorder %s19, 2
      // Predicated region
      $region21: #{tpu_custom_call.1} parent=5 // pred_check
        %p325 = pneg %p324
      $region22: #{tpu_custom_call.1} parent=5 // pred_check_branch
        %327 = sbr.rel (%p325) target = $region24
      $region23: #{tpu_custom_call.1} parent=5 // pred_region
        // Predicated region
        $region25: #{tpu_custom_call.1} parent=23 // pred_check
          %p328 = pneg %p103
        $region26: #{tpu_custom_call.1} parent=23 // pred_check_branch
          %330 = sbr.rel (%p328) target = $region28
        $region27: #{tpu_custom_call.1} parent=23 // pred_region
          %p331 = scmp.lt.s32.totalorder %s27, 1
          %s332 = scalar_select %p331, %s27, 1
          %s333 = smul.addr %s332, 4
          %s334 = smul.addr %s333, 8
          %s335 = scalar_lea.vmem %s2, %s334
        $region28: #{tpu_custom_call.1} parent=23 // pred_fallthru
          _
        // Predicated region
        $region29: #{tpu_custom_call.1} parent=23 // pred_check
          %p336 = pneg %p129
        $region30: #{tpu_custom_call.1} parent=23 // pred_check_branch
          %338 = sbr.rel (%p336) target = $region32
        $region31: #{tpu_custom_call.1} parent=23 // pred_region
          %p339 = scmp.lt.s32.totalorder %s27, 1
          %s340 = scalar_select %p339, %s27, 1
          %s341 = smul.addr %s340, 4
          %s342 = smul.addr %s341, 8
          %s343 = scalar_lea.vmem %s3, %s342
        $region32: #{tpu_custom_call.1} parent=23 // pred_fallthru
          _
        // Predicated region
        $region33: #{tpu_custom_call.1} parent=23 // pred_check
          %p344 = pneg %p155
        $region34: #{tpu_custom_call.1} parent=23 // pred_check_branch
          %346 = sbr.rel (%p344) target = $region36
        $region35: #{tpu_custom_call.1} parent=23 // pred_region
          %p347 = scmp.lt.s32.totalorder %s27, 1
          %s348 = scalar_select %p347, %s27, 1
          %s349 = smul.addr %s348, 4
          %s350 = smul.addr %s349, 8
          %s351 = scalar_lea.vmem %s4, %s350
        $region36: #{tpu_custom_call.1} parent=23 // pred_fallthru
          _
        // Predicated region
        $region37: #{tpu_custom_call.1} parent=23 // pred_check
          %p352 = pneg %p181
        $region38: #{tpu_custom_call.1} parent=23 // pred_check_branch
          %354 = sbr.rel (%p352) target = $region40
        $region39: #{tpu_custom_call.1} parent=23 // pred_region
          %s355 = sand.u32 %s171, 1
          %s356 = scalar_lea.sflag [#allocation4], %s355
          %s357 = sand.u32 %s171, 1
          %s358 = smul.addr %s357, 32
          %s359 = scalar_lea.vmem [#allocation3], %s358
          %361 = vsyncadd %s356, 0
          %s362 = smul.addr %s27, 4
          %s363 = smul.addr %s362, 8
          %s364 = scalar_lea.hbm %s5, %s363
          %s365 = sshll.u32 %s364, 4
          %s366 = int_to_ptr.hbm [resolvable:$true] %s365
          %s367 = sshll.u32 %s359, 4
          %s368 = int_to_ptr.vmem [resolvable:$true] %s367
          %373 = dma.hbm_to_vmem [thread:$0]  %s366, 512, %s368, %s356, 128, 128, 8
        $region40: #{tpu_custom_call.1} parent=23 // pred_fallthru
          _
        // Predicated region
        $region41: #{tpu_custom_call.1} parent=23 // pred_check
          %p374 = pneg %p207
        $region42: #{tpu_custom_call.1} parent=23 // pred_check_branch
          %376 = sbr.rel (%p374) target = $region44
        $region43: #{tpu_custom_call.1} parent=23 // pred_region
          %p377 = scmp.lt.s32.totalorder %s27, 1
          %s378 = scalar_select %p377, %s27, 1
          %s379 = smul.addr %s378, 8
          %s380 = smul.addr %s379, 8
          %s381 = scalar_lea.vmem %s6, %s380
        $region44: #{tpu_custom_call.1} parent=23 // pred_fallthru
          _
        // Predicated region
        $region45: #{tpu_custom_call.1} parent=23 // pred_check
          %p382 = pneg %p233
        $region46: #{tpu_custom_call.1} parent=23 // pred_check_branch
          %384 = sbr.rel (%p382) target = $region48
        $region47: #{tpu_custom_call.1} parent=23 // pred_region
          %p385 = scmp.lt.s32.totalorder %s27, 1
          %s386 = scalar_select %p385, %s27, 1
          %s387 = smul.addr %s386, 2
          %s388 = smul.addr %s387, 8
          %s389 = scalar_lea.vmem %s7, %s388
        $region48: #{tpu_custom_call.1} parent=23 // pred_fallthru
          _
        // Predicated region
        $region49: #{tpu_custom_call.1} parent=23 // pred_check
          %p390 = pneg %p259
        $region50: #{tpu_custom_call.1} parent=23 // pred_check_branch
          %392 = sbr.rel (%p390) target = $region52
        $region51: #{tpu_custom_call.1} parent=23 // pred_region
          %p393 = scmp.lt.s32.totalorder %s27, 1
          %s394 = scalar_select %p393, %s27, 1
          %s395 = scalar_lea.vmem %s8, %s394
        $region52: #{tpu_custom_call.1} parent=23 // pred_fallthru
          _
      $region24: #{tpu_custom_call.1} parent=5 // pred_fallthru
        _
      %p396 = scmp.le.s32.totalorder 1, %s19
      %p397 = scmp.lt.s32.totalorder %s19, 3
      %p398 = pnand %p396, %p397
      %p399 = pneg %p398
      // Predicated region
      $region53: #{tpu_custom_call.1} parent=5 // pred_check
        _
      $region54: #{tpu_custom_call.1} parent=5 // pred_check_branch
        %401 = sbr.rel (%p398) target = $region56
      $region55: #{tpu_custom_call.1} parent=5 // pred_region
        %s402 = ssub.s32 %s19, 1
        %s403 = sand.u32 %s174, 1
        %s404 = scalar_lea.sflag [#allocation4], %s403
        %s405 = sand.u32 %s174, 1
        %s406 = smul.addr %s405, 32
        %s407 = scalar_lea.vmem [#allocation3], %s406
        // Predicated region
        $region57: #{tpu_custom_call.1} parent=55 // pred_check
          %p408 = pneg %p187
        $region58: #{tpu_custom_call.1} parent=55 // pred_check_branch
          %410 = sbr.rel (%p408) target = $region60
        $region59: #{tpu_custom_call.1} parent=55 // pred_region
          %412 = dma.done %s404, 512
        $region60: #{tpu_custom_call.1} parent=55 // pred_fallthru
          _
        %s413 = smul.u32 2, %s28
        %p414 = scmp.lt.s32.totalorder %s413, 1
        %s415 = scalar_select %p414, %s413, 1
        %s416 = smul.addr %s415, 8
        %s417 = scalar_lea.vmem %s0, %s416
        %p418 = pneg %p57
        %p419 = pneg %p54
        %s420 = smul.u32 2, %s28
        %p421 = scmp.lt.s32.totalorder %s420, 1
        %s422 = scalar_select %p421, %s420, 1
        %s423 = smul.addr %s422, 8
        %s424 = scalar_lea.vmem %s1, %s423
        %p425 = pneg %p83
        %p426 = pneg %p80
        %p427 = scmp.lt.s32.totalorder %s29, 1
        %s428 = scalar_select %p427, %s29, 1
        %s429 = smul.addr %s428, 4
        %s430 = smul.addr %s429, 8
        %s431 = scalar_lea.vmem %s2, %s430
        %p432 = pneg %p109
        %p433 = pneg %p106
        %p434 = scmp.lt.s32.totalorder %s29, 1
        %s435 = scalar_select %p434, %s29, 1
        %s436 = smul.addr %s435, 4
        %s437 = smul.addr %s436, 8
        %s438 = scalar_lea.vmem %s3, %s437
        %p439 = pneg %p135
        %p440 = pneg %p132
        %p441 = scmp.lt.s32.totalorder %s29, 1
        %s442 = scalar_select %p441, %s29, 1
        %s443 = smul.addr %s442, 4
        %s444 = smul.addr %s443, 8
        %s445 = scalar_lea.vmem %s4, %s444
        %p446 = pneg %p161
        %p447 = pneg %p158
        %s448 = sand.u32 %s174, 1
        %s449 = scalar_lea.sflag [#allocation4], %s448
        %s450 = sand.u32 %s174, 1
        %s451 = smul.addr %s450, 32
        %s452 = scalar_lea.vmem [#allocation3], %s451
        %p453 = pneg %p187
        %p454 = pneg %p184
        %p455 = scmp.lt.s32.totalorder %s29, 1
        %s456 = scalar_select %p455, %s29, 1
        %s457 = smul.addr %s456, 8
        %s458 = smul.addr %s457, 8
        %s459 = scalar_lea.vmem %s6, %s458
        %p460 = pneg %p213
        %p461 = pneg %p210
        %p462 = scmp.lt.s32.totalorder %s29, 1
        %s463 = scalar_select %p462, %s29, 1
        %s464 = smul.addr %s463, 2
        %s465 = smul.addr %s464, 8
        %s466 = scalar_lea.vmem %s7, %s465
        %p467 = pneg %p239
        %p468 = pneg %p236
        %p469 = scmp.lt.s32.totalorder %s29, 1
        %s470 = scalar_select %p469, %s29, 1
        %s471 = scalar_lea.vmem %s8, %s470
        %p472 = pneg %p265
        %p473 = pneg %p262
        %p474 = pneg %p291
        %p475 = pneg %p288
        %s476 = smul.u32 2, %s28
        %p477 = scmp.lt.s32.totalorder %s476, 1
        %s478 = scalar_select %p477, %s476, 1
        %s479 = smul.addr %s478, 8
        %s480 = scalar_lea.vmem %s0, %s479
        %s481 = smul.u32 2, %s28
        %s482 = smul.u32 2, %s28
        %p483 = scmp.lt.s32.totalorder %s482, 1
        %s484 = scalar_select %p483, %s482, 1
        %s485 = smul.addr %s484, 8
        %s486 = scalar_lea.vmem %s1, %s485
        %s487 = smul.u32 2, %s28
        %p488 = scmp.lt.s32.totalorder %s29, 1
        %s489 = scalar_select %p488, %s29, 1
        %s490 = smul.addr %s489, 4
        %s491 = smul.addr %s490, 8
        %s492 = scalar_lea.vmem %s2, %s491
        %p493 = scmp.lt.s32.totalorder %s29, 1
        %s494 = scalar_select %p493, %s29, 1
        %s495 = smul.addr %s494, 4
        %s496 = smul.addr %s495, 8
        %s497 = scalar_lea.vmem %s3, %s496
        %p498 = scmp.lt.s32.totalorder %s29, 1
        %s499 = scalar_select %p498, %s29, 1
        %s500 = smul.addr %s499, 4
        %s501 = smul.addr %s500, 8
        %s502 = scalar_lea.vmem %s4, %s501
        %p503 = scmp.lt.s32.totalorder %s29, 1
        %s504 = scalar_select %p503, %s29, 1
        %s505 = smul.addr %s504, 8
        %s506 = smul.addr %s505, 8
        %s507 = scalar_lea.vmem %s6, %s506
        %p508 = scmp.lt.s32.totalorder %s29, 1
        %s509 = scalar_select %p508, %s29, 1
        %s510 = smul.addr %s509, 2
        %s511 = smul.addr %s510, 8
        %s512 = scalar_lea.vmem %s7, %s511
        %p513 = scmp.lt.s32.totalorder %s29, 1
        %s514 = scalar_select %p513, %s29, 1
        %s515 = scalar_lea.vmem %s8, %s514
        %s516 = smul.u32 2, %s28
        %p517 = scmp.eq.s32.totalorder %s29, 0
        // Predicated region
        $region61: #{tpu_custom_call.1} parent=55 // pred_check
          %p518 = pneg %p517
        $region62: #{tpu_custom_call.1} parent=55 // pred_check_branch
          %520 = sbr.rel (%p518) target = $region64
        $region63: #{tpu_custom_call.1} parent=55 // pred_region
          %v521 = vld [vmem:[%s480] sm:$0xff]
          %v522 = vld [vmem:[%s480 + $0x8] sm:$0xff]
          %vm523 = vcmask 261120
          %524 = vst.msk [vmem:[#allocation2] sm:$0xff] %vm523, %v521
          %525 = vst.msk [vmem:[#allocation2 + $0x8] sm:$0xff] %vm523, %v522
        $region64: #{tpu_custom_call.1} parent=55 // pred_fallthru
          _
        %v526 = vld [vmem:[#allocation2] sm:$0xff]
        %v527 = vld [vmem:[#allocation2 + $0x8] sm:$0xff]
        %v528 = vld [vmem:[%s486] sm:$0xff]
        %v529 = vld [vmem:[%s486 + $0x8] sm:$0xff]
        %v530 = vld [vmem:[%s512] sm:$0xff]
        %v531 = vld [vmem:[%s512 + $0x8] sm:$0x1]
        %v532 = vld [vmem:[%s502] sm:$0xff]
        %v533 = vld [vmem:[%s502 + $0x8] sm:$0xff]
        %v534 = vld [vmem:[%s502 + $0x10] sm:$0xff]
        %v535 = vld [vmem:[%s502 + $0x18] sm:$0xff]
        %v536 = vadd.f32 %v526, %v528
        %v537 = vadd.f32 %v527, %v529
        %v538 = vld [vmem:[%s492] sm:$0xff]
        %v539 = vld [vmem:[%s492 + $0x8] sm:$0xff]
        %v540 = vld [vmem:[%s492 + $0x10] sm:$0xff]
        %v541 = vld [vmem:[%s492 + $0x18] sm:$0xff]
        %vm542 = vcmask 261120
        %v544 = vsel %vm542, %v536, 0
        %v547 = vsel %vm542, %v537, 0
        %549 = vmatpush.msra.mxu0 0.0
        %550 = vmatpush.msra.mxu0 0.0
        %551 = vmatpush.msra.mxu0 0.0
        %552 = vmatpush.msra.mxu0 0.0
        %553 = vmatpush.msra.mxu0 0.0
        %554 = vmatpush.msra.mxu0 0.0
        %555 = vmatpush.msra.mxu0 0.0
        %556 = vmatpush.msra.mxu0 0.0
        %557 = vmatpush.msra.mxu0 0.0
        %558 = vmatpush.msra.mxu0 0.0
        %559 = vmatpush.msra.mxu0 0.0
        %560 = vmatpush.msra.mxu0 0.0
        %561 = vmatpush.msra.mxu0 %v541
        %562 = vmatpush.msra.mxu0 %v540
        %563 = vmatpush.msra.mxu0 %v539
        %564 = vmatpush.msra.mxu0 %v538
        %565 = vmatmul.f32.gmra.mxu0 %v544
        %v566 = vpop.f32.mrf.mxu0
        %v567 = vadd.f32 0.0, %v566
        %568 = vmatmul.f32.gmra.mxu0 %v547
        %v569 = vpop.f32.mrf.mxu0
        %v570 = vadd.f32 0.0, %v569
        %571 = vdwg.mxu0
        %v572 = vld [vmem:[%s497] sm:$0xff]
        %v573 = vld [vmem:[%s497 + $0x8] sm:$0xff]
        %v574 = vld [vmem:[%s497 + $0x10] sm:$0xff]
        %v575 = vld [vmem:[%s497 + $0x18] sm:$0xff]
        %v576 = vperm.slane %v530, 2
        %v578 = vsel %vm542, %v526, 0
        %v581 = vsel %vm542, %v527, 0
        %583 = vmatpush.msra.mxu0 0.0
        %584 = vmatpush.msra.mxu0 0.0
        %585 = vmatpush.msra.mxu0 0.0
        %586 = vmatpush.msra.mxu0 0.0
        %587 = vmatpush.msra.mxu0 0.0
        %588 = vmatpush.msra.mxu0 0.0
        %589 = vmatpush.msra.mxu0 0.0
        %590 = vmatpush.msra.mxu0 0.0
        %591 = vmatpush.msra.mxu0 0.0
        %592 = vmatpush.msra.mxu0 0.0
        %593 = vmatpush.msra.mxu0 0.0
        %594 = vmatpush.msra.mxu0 0.0
        %595 = vmatpush.msra.mxu0 %v575
        %596 = vmatpush.msra.mxu0 %v574
        %597 = vmatpush.msra.mxu0 %v573
        %598 = vmatpush.msra.mxu0 %v572
        %599 = vmatmul.f32.gmra.mxu0 %v578
        %v600 = vpop.f32.mrf.mxu0
        %v601 = vadd.f32 %v576, %v600
        %602 = vmatmul.f32.gmra.mxu0 %v581
        %v603 = vpop.f32.mrf.mxu0
        %v604 = vadd.f32 %v576, %v603
        %605 = vdwg.mxu0
        %v606 = vperm.slane %v530, 0
        %v607 = vadd.f32 %v567, %v606
        %v608 = vadd.f32 %v570, %v606
        %v609 = vperm.slane %v530, 1
        %611 = vrot.lane.b32.xlu0 %v609, 32
        %v612 = vpop.permute.xlu0 %611
        %v614 = vadd.f32 %v567, %v612
        %v615 = vadd.f32 %v570, %v612
        %617 = vrot.lane.b32.xlu0 %v614, 96
        %v618 = vpop.permute.xlu0 %617
        %vm619 = vcmask 64512
        %v621 = vsel %vm619, %v607, 0
        %v623 = vsel %vm619, %v618, 0
        %625 = vmatpush.xpose.msra.mxu0 0.0
        %626 = vmatpush.xpose.msra.mxu0 0.0
        %627 = vmatpush.xpose.msra.mxu0 0.0
        %628 = vmatpush.xpose.msra.mxu0 0.0
        %629 = vmatpush.xpose.msra.mxu0 0.0
        %630 = vmatpush.xpose.msra.mxu0 0.0
        %631 = vmatpush.xpose.msra.mxu0 0.0
        %632 = vmatpush.xpose.msra.mxu0 0.0
        %633 = vmatpush.xpose.msra.mxu0 0.0
        %634 = vmatpush.xpose.msra.mxu0 0.0
        %635 = vmatpush.xpose.msra.mxu0 0.0
        %636 = vmatpush.xpose.msra.mxu0 0.0
        %637 = vmatpush.xpose.msra.mxu0 0.0
        %638 = vmatpush.xpose.msra.mxu0 0.0
        %639 = vmatpush.xpose.msra.mxu0 0.0
        %640 = vmatpush.xpose.msra.mxu0 %v623
        %641 = vmatmul.f32.gmra.mxu0 %v621
        %v642 = vpop.f32.mrf.mxu0
        %v643 = vadd.f32 0.0, %v642
        %644 = vdwg.mxu0
        %646 = vrot.lane.b32.xlu0 %v615, 96
        %v647 = vpop.permute.xlu0 %646
        %v649 = vsel %vm619, %v608, 0
        %v651 = vsel %vm619, %v647, 0
        %653 = vmatpush.xpose.msra.mxu0 0.0
        %654 = vmatpush.xpose.msra.mxu0 0.0
        %655 = vmatpush.xpose.msra.mxu0 0.0
        %656 = vmatpush.xpose.msra.mxu0 0.0
        %657 = vmatpush.xpose.msra.mxu0 0.0
        %658 = vmatpush.xpose.msra.mxu0 0.0
        %659 = vmatpush.xpose.msra.mxu0 0.0
        %660 = vmatpush.xpose.msra.mxu0 0.0
        %661 = vmatpush.xpose.msra.mxu0 0.0
        %662 = vmatpush.xpose.msra.mxu0 0.0
        %663 = vmatpush.xpose.msra.mxu0 0.0
        %664 = vmatpush.xpose.msra.mxu0 0.0
        %665 = vmatpush.xpose.msra.mxu0 0.0
        %666 = vmatpush.xpose.msra.mxu0 0.0
        %667 = vmatpush.xpose.msra.mxu0 0.0
        %668 = vmatpush.xpose.msra.mxu0 %v651
        %669 = vmatmul.f32.gmra.mxu0 %v649
        %v670 = vpop.f32.mrf.mxu0
        %v671 = vadd.f32 0.0, %v670
        %672 = vdwg.mxu0
        %v673 = vsel %vm619, %v643, -inf
        %674 = vmax.xlane.f32.xlu0 %v673
        %v675 = vpop.xlane.xlu0 %674
        %v676 = vsel %vm619, %v671, -inf
        %677 = vmax.xlane.f32.xlu0 %v676
        %v678 = vpop.xlane.xlu0 %677
        %v679 = vsub.f32 %v643, %v675
        %v680 = vsub.f32 %v671, %v678
        %v681 = vmul.f32 %v679, 1.442695
        %v682 = vpow.pop %v681
        %v683 = vmul.f32 %v680, 1.442695
        %v684 = vpow.pop %v683
        %v685 = vsel %vm619, %v682, 0.0
        %686 = vadd.xlane.f32.xlu0 %v685
        %v687 = vpop.xlane.xlu0 %686
        %v688 = vsel %vm619, %v684, 0.0
        %689 = vadd.xlane.f32.xlu0 %v688
        %v690 = vpop.xlane.xlu0 %689
        %v691 = vrcp.pop %v687
        %v692 = vmul.f32 %v687, %v691
        %v693 = vsub.f32 1.0, %v692
        %v694 = vmul.f32 %v691, %v693
        %v695 = vadd.f32 %v691, %v694
        %vm696 = vweird.f32 %v687
        %vm697 = vweird.f32 %v691
        %vm698 = vmor %vm696, %vm697
        %v699 = vsel %vm698, %v691, %v695
        %v700 = vand.u32 2147483647, %v687
        %vm701 = vcmp.eq.f32.partialorder %v700, 8.507059e+37
        %v702 = vand.u32 %v687, 2147483648
        %v703 = vor.u32 1.1754944e-38, %v702
        %v704 = vsel %vm701, %v703, %v699
        %v705 = vrcp.pop %v690
        %v706 = vmul.f32 %v690, %v705
        %v707 = vsub.f32 1.0, %v706
        %v708 = vmul.f32 %v705, %v707
        %v709 = vadd.f32 %v705, %v708
        %vm710 = vweird.f32 %v690
        %vm711 = vweird.f32 %v705
        %vm712 = vmor %vm710, %vm711
        %v713 = vsel %vm712, %v705, %v709
        %v714 = vand.u32 2147483647, %v690
        %vm715 = vcmp.eq.f32.partialorder %v714, 8.507059e+37
        %v716 = vand.u32 %v690, 2147483648
        %v717 = vor.u32 1.1754944e-38, %v716
        %v718 = vsel %vm715, %v717, %v713
        %v719 = vmul.f32 %v682, %v704
        %v720 = vmul.f32 %v684, %v718
        %v722 = vsel %vm619, %v719, 0
        %724 = vmatpush.msra.mxu0 0.0
        %725 = vmatpush.msra.mxu0 0.0
        %726 = vmatpush.msra.mxu0 0.0
        %727 = vmatpush.msra.mxu0 0.0
        %728 = vmatpush.msra.mxu0 0.0
        %729 = vmatpush.msra.mxu0 0.0
        %730 = vmatpush.msra.mxu0 0.0
        %731 = vmatpush.msra.mxu0 0.0
        %732 = vmatpush.msra.mxu0 0.0
        %733 = vmatpush.msra.mxu0 0.0
        %734 = vmatpush.msra.mxu0 0.0
        %735 = vmatpush.msra.mxu0 0.0
        %736 = vmatpush.msra.mxu0 0.0
        %737 = vmatpush.msra.mxu0 0.0
        %738 = vmatpush.msra.mxu0 0.0
        %739 = vmatpush.msra.mxu0 %v601
        %740 = vmatmul.f32.gmra.mxu0 %v722
        %v741 = vpop.f32.mrf.mxu0
        %v742 = vadd.f32 0.0, %v741
        %743 = vdwg.mxu0
        %v745 = vsel %vm619, %v720, 0
        %747 = vmatpush.msra.mxu0 0.0
        %748 = vmatpush.msra.mxu0 0.0
        %749 = vmatpush.msra.mxu0 0.0
        %750 = vmatpush.msra.mxu0 0.0
        %751 = vmatpush.msra.mxu0 0.0
        %752 = vmatpush.msra.mxu0 0.0
        %753 = vmatpush.msra.mxu0 0.0
        %754 = vmatpush.msra.mxu0 0.0
        %755 = vmatpush.msra.mxu0 0.0
        %756 = vmatpush.msra.mxu0 0.0
        %757 = vmatpush.msra.mxu0 0.0
        %758 = vmatpush.msra.mxu0 0.0
        %759 = vmatpush.msra.mxu0 0.0
        %760 = vmatpush.msra.mxu0 0.0
        %761 = vmatpush.msra.mxu0 0.0
        %762 = vmatpush.msra.mxu0 %v604
        %763 = vmatmul.f32.gmra.mxu0 %v745
        %v764 = vpop.f32.mrf.mxu0
        %v765 = vadd.f32 0.0, %v764
        %766 = vdwg.mxu0
        %767 = vrot.lane.b32.xlu0 %v607, 120
        %v768 = vpop.permute.xlu0 %767
        %769 = vrot.lane.b32.xlu0 %v614, 88
        %v770 = vpop.permute.xlu0 %769
        %v771 = vsel %vm619, %v768, 0
        %v773 = vsel %vm619, %v770, 0
        %775 = vmatpush.xpose.msra.mxu0 0.0
        %776 = vmatpush.xpose.msra.mxu0 0.0
        %777 = vmatpush.xpose.msra.mxu0 0.0
        %778 = vmatpush.xpose.msra.mxu0 0.0
        %779 = vmatpush.xpose.msra.mxu0 0.0
        %780 = vmatpush.xpose.msra.mxu0 0.0
        %781 = vmatpush.xpose.msra.mxu0 0.0
        %782 = vmatpush.xpose.msra.mxu0 0.0
        %783 = vmatpush.xpose.msra.mxu0 0.0
        %784 = vmatpush.xpose.msra.mxu0 0.0
        %785 = vmatpush.xpose.msra.mxu0 0.0
        %786 = vmatpush.xpose.msra.mxu0 0.0
        %787 = vmatpush.xpose.msra.mxu0 0.0
        %788 = vmatpush.xpose.msra.mxu0 0.0
        %789 = vmatpush.xpose.msra.mxu0 0.0
        %790 = vmatpush.xpose.msra.mxu0 %v773
        %791 = vmatmul.f32.gmra.mxu0 %v771
        %v792 = vpop.f32.mrf.mxu0
        %v793 = vadd.f32 0.0, %v792
        %794 = vdwg.mxu0
        %795 = vrot.lane.b32.xlu0 %v608, 120
        %v796 = vpop.permute.xlu0 %795
        %797 = vrot.lane.b32.xlu0 %v615, 88
        %v798 = vpop.permute.xlu0 %797
        %v799 = vsel %vm619, %v796, 0
        %v801 = vsel %vm619, %v798, 0
        %803 = vmatpush.xpose.msra.mxu0 0.0
        %804 = vmatpush.xpose.msra.mxu0 0.0
        %805 = vmatpush.xpose.msra.mxu0 0.0
        %806 = vmatpush.xpose.msra.mxu0 0.0
        %807 = vmatpush.xpose.msra.mxu0 0.0
        %808 = vmatpush.xpose.msra.mxu0 0.0
        %809 = vmatpush.xpose.msra.mxu0 0.0
        %810 = vmatpush.xpose.msra.mxu0 0.0
        %811 = vmatpush.xpose.msra.mxu0 0.0
        %812 = vmatpush.xpose.msra.mxu0 0.0
        %813 = vmatpush.xpose.msra.mxu0 0.0
        %814 = vmatpush.xpose.msra.mxu0 0.0
        %815 = vmatpush.xpose.msra.mxu0 0.0
        %816 = vmatpush.xpose.msra.mxu0 0.0
        %817 = vmatpush.xpose.msra.mxu0 0.0
        %818 = vmatpush.xpose.msra.mxu0 %v801
        %819 = vmatmul.f32.gmra.mxu0 %v799
        %v820 = vpop.f32.mrf.mxu0
        %v821 = vadd.f32 0.0, %v820
        %822 = vdwg.mxu0
        %v823 = vsel %vm619, %v793, -inf
        %824 = vmax.xlane.f32.xlu0 %v823
        %v825 = vpop.xlane.xlu0 %824
        %v826 = vsel %vm619, %v821, -inf
        %827 = vmax.xlane.f32.xlu0 %v826
        %v828 = vpop.xlane.xlu0 %827
        %v829 = vsub.f32 %v793, %v825
        %v830 = vsub.f32 %v821, %v828
        %v831 = vmul.f32 %v829, 1.442695
        %v832 = vpow.pop %v831
        %v833 = vmul.f32 %v830, 1.442695
        %v834 = vpow.pop %v833
        %v835 = vsel %vm619, %v832, 0.0
        %836 = vadd.xlane.f32.xlu0 %v835
        %v837 = vpop.xlane.xlu0 %836
        %v838 = vsel %vm619, %v834, 0.0
        %839 = vadd.xlane.f32.xlu0 %v838
        %v840 = vpop.xlane.xlu0 %839
        %v841 = vrcp.pop %v837
        %v842 = vmul.f32 %v837, %v841
        %v843 = vsub.f32 1.0, %v842
        %v844 = vmul.f32 %v841, %v843
        %v845 = vadd.f32 %v841, %v844
        %vm846 = vweird.f32 %v837
        %vm847 = vweird.f32 %v841
        %vm848 = vmor %vm846, %vm847
        %v849 = vsel %vm848, %v841, %v845
        %v850 = vand.u32 2147483647, %v837
        %vm851 = vcmp.eq.f32.partialorder %v850, 8.507059e+37
        %v852 = vand.u32 %v837, 2147483648
        %v853 = vor.u32 1.1754944e-38, %v852
        %v854 = vsel %vm851, %v853, %v849
        %v855 = vrcp.pop %v840
        %v856 = vmul.f32 %v840, %v855
        %v857 = vsub.f32 1.0, %v856
        %v858 = vmul.f32 %v855, %v857
        %v859 = vadd.f32 %v855, %v858
        %vm860 = vweird.f32 %v840
        %vm861 = vweird.f32 %v855
        %vm862 = vmor %vm860, %vm861
        %v863 = vsel %vm862, %v855, %v859
        %v864 = vand.u32 2147483647, %v840
        %vm865 = vcmp.eq.f32.partialorder %v864, 8.507059e+37
        %v866 = vand.u32 %v840, 2147483648
        %v867 = vor.u32 1.1754944e-38, %v866
        %v868 = vsel %vm865, %v867, %v863
        %v869 = vmul.f32 %v832, %v854
        %v870 = vmul.f32 %v834, %v868
        %872 = vrot.lane.b32.xlu0 %v601, 120
        %v873 = vpop.permute.xlu0 %872
        %v876 = vsel %vm619, %v869, 0
        %878 = vmatpush.msra.mxu0 0.0
        %879 = vmatpush.msra.mxu0 0.0
        %880 = vmatpush.msra.mxu0 0.0
        %881 = vmatpush.msra.mxu0 0.0
        %882 = vmatpush.msra.mxu0 0.0
        %883 = vmatpush.msra.mxu0 0.0
        %884 = vmatpush.msra.mxu0 0.0
        %885 = vmatpush.msra.mxu0 0.0
        %886 = vmatpush.msra.mxu0 0.0
        %887 = vmatpush.msra.mxu0 0.0
        %888 = vmatpush.msra.mxu0 0.0
        %889 = vmatpush.msra.mxu0 0.0
        %890 = vmatpush.msra.mxu0 0.0
        %891 = vmatpush.msra.mxu0 0.0
        %892 = vmatpush.msra.mxu0 0.0
        %893 = vmatpush.msra.mxu0 %v873
        %894 = vmatmul.f32.gmra.mxu0 %v876
        %v895 = vpop.f32.mrf.mxu0
        %v896 = vadd.f32 0.0, %v895
        %897 = vdwg.mxu0
        %899 = vrot.lane.b32.xlu0 %v604, 120
        %v900 = vpop.permute.xlu0 %899
        %v903 = vsel %vm619, %v870, 0
        %905 = vmatpush.msra.mxu0 0.0
        %906 = vmatpush.msra.mxu0 0.0
        %907 = vmatpush.msra.mxu0 0.0
        %908 = vmatpush.msra.mxu0 0.0
        %909 = vmatpush.msra.mxu0 0.0
        %910 = vmatpush.msra.mxu0 0.0
        %911 = vmatpush.msra.mxu0 0.0
        %912 = vmatpush.msra.mxu0 0.0
        %913 = vmatpush.msra.mxu0 0.0
        %914 = vmatpush.msra.mxu0 0.0
        %915 = vmatpush.msra.mxu0 0.0
        %916 = vmatpush.msra.mxu0 0.0
        %917 = vmatpush.msra.mxu0 0.0
        %918 = vmatpush.msra.mxu0 0.0
        %919 = vmatpush.msra.mxu0 0.0
        %920 = vmatpush.msra.mxu0 %v900
        %921 = vmatmul.f32.gmra.mxu0 %v903
        %v922 = vpop.f32.mrf.mxu0
        %v923 = vadd.f32 0.0, %v922
        %924 = vdwg.mxu0
        %v926 = vsel %vm619, %v896, 0
        %v929 = vsel %vm619, %v923, 0
        %931 = vmatpush.msra.mxu0 0.0
        %932 = vmatpush.msra.mxu0 0.0
        %933 = vmatpush.msra.mxu0 0.0
        %934 = vmatpush.msra.mxu0 0.0
        %935 = vmatpush.msra.mxu0 0.0
        %936 = vmatpush.msra.mxu0 0.0
        %937 = vmatpush.msra.mxu0 0.0
        %938 = vmatpush.msra.mxu0 0.0
        %939 = vmatpush.msra.mxu0 0.0
        %940 = vmatpush.msra.mxu0 0.0
        %941 = vmatpush.msra.mxu0 0.0
        %942 = vmatpush.msra.mxu0 0.0
        %943 = vmatpush.msra.mxu0 0.0
        %944 = vmatpush.msra.mxu0 0.0
        %945 = vmatpush.msra.mxu0 0.0
        %946 = vmatpush.msra.mxu0 %v533
        %947 = vmatmul.f32.gmra.mxu0 %v926
        %v948 = vpop.f32.mrf.mxu0
        %v949 = vadd.f32 0.0, %v948
        %950 = vmatmul.f32.gmra.mxu0 %v929
        %v951 = vpop.f32.mrf.mxu0
        %v952 = vadd.f32 0.0, %v951
        %953 = vdwg.mxu0
        %v955 = vsel %vm619, %v742, 0
        %v958 = vsel %vm619, %v765, 0
        %960 = vmatpush.msra.mxu0 0.0
        %961 = vmatpush.msra.mxu0 0.0
        %962 = vmatpush.msra.mxu0 0.0
        %963 = vmatpush.msra.mxu0 0.0
        %964 = vmatpush.msra.mxu0 0.0
        %965 = vmatpush.msra.mxu0 0.0
        %966 = vmatpush.msra.mxu0 0.0
        %967 = vmatpush.msra.mxu0 0.0
        %968 = vmatpush.msra.mxu0 0.0
        %969 = vmatpush.msra.mxu0 0.0
        %970 = vmatpush.msra.mxu0 0.0
        %971 = vmatpush.msra.mxu0 0.0
        %972 = vmatpush.msra.mxu0 0.0
        %973 = vmatpush.msra.mxu0 0.0
        %974 = vmatpush.msra.mxu0 0.0
        %975 = vmatpush.msra.mxu0 %v532
        %976 = vmatmul.f32.gmra.mxu0 %v955
        %v977 = vpop.f32.mrf.mxu0
        %v978 = vadd.f32 %v949, %v977
        %979 = vmatmul.f32.gmra.mxu0 %v958
        %v980 = vpop.f32.mrf.mxu0
        %v981 = vadd.f32 %v952, %v980
        %982 = vdwg.mxu0
        %983 = vrot.lane.b32.xlu0 %v607, 112
        %v984 = vpop.permute.xlu0 %983
        %985 = vrot.lane.b32.xlu0 %v614, 80
        %v986 = vpop.permute.xlu0 %985
        %v987 = vsel %vm619, %v984, 0
        %v989 = vsel %vm619, %v986, 0
        %991 = vmatpush.xpose.msra.mxu0 0.0
        %992 = vmatpush.xpose.msra.mxu0 0.0
        %993 = vmatpush.xpose.msra.mxu0 0.0
        %994 = vmatpush.xpose.msra.mxu0 0.0
        %995 = vmatpush.xpose.msra.mxu0 0.0
        %996 = vmatpush.xpose.msra.mxu0 0.0
        %997 = vmatpush.xpose.msra.mxu0 0.0
        %998 = vmatpush.xpose.msra.mxu0 0.0
        %999 = vmatpush.xpose.msra.mxu0 0.0
        %1000 = vmatpush.xpose.msra.mxu0 0.0
        %1001 = vmatpush.xpose.msra.mxu0 0.0
        %1002 = vmatpush.xpose.msra.mxu0 0.0
        %1003 = vmatpush.xpose.msra.mxu0 0.0
        %1004 = vmatpush.xpose.msra.mxu0 0.0
        %1005 = vmatpush.xpose.msra.mxu0 0.0
        %1006 = vmatpush.xpose.msra.mxu0 %v989
        %1007 = vmatmul.f32.gmra.mxu0 %v987
        %v1008 = vpop.f32.mrf.mxu0
        %v1009 = vadd.f32 0.0, %v1008
        %1010 = vdwg.mxu0
        %1011 = vrot.lane.b32.xlu0 %v608, 112
        %v1012 = vpop.permute.xlu0 %1011
        %1013 = vrot.lane.b32.xlu0 %v615, 80
        %v1014 = vpop.permute.xlu0 %1013
        %v1015 = vsel %vm619, %v1012, 0
        %v1017 = vsel %vm619, %v1014, 0
        %1019 = vmatpush.xpose.msra.mxu0 0.0
        %1020 = vmatpush.xpose.msra.mxu0 0.0
        %1021 = vmatpush.xpose.msra.mxu0 0.0
        %1022 = vmatpush.xpose.msra.mxu0 0.0
        %1023 = vmatpush.xpose.msra.mxu0 0.0
        %1024 = vmatpush.xpose.msra.mxu0 0.0
        %1025 = vmatpush.xpose.msra.mxu0 0.0
        %1026 = vmatpush.xpose.msra.mxu0 0.0
        %1027 = vmatpush.xpose.msra.mxu0 0.0
        %1028 = vmatpush.xpose.msra.mxu0 0.0
        %1029 = vmatpush.xpose.msra.mxu0 0.0
        %1030 = vmatpush.xpose.msra.mxu0 0.0
        %1031 = vmatpush.xpose.msra.mxu0 0.0
        %1032 = vmatpush.xpose.msra.mxu0 0.0
        %1033 = vmatpush.xpose.msra.mxu0 0.0
        %1034 = vmatpush.xpose.msra.mxu0 %v1017
        %1035 = vmatmul.f32.gmra.mxu0 %v1015
        %v1036 = vpop.f32.mrf.mxu0
        %v1037 = vadd.f32 0.0, %v1036
        %1038 = vdwg.mxu0
        %v1039 = vsel %vm619, %v1009, -inf
        %1040 = vmax.xlane.f32.xlu0 %v1039
        %v1041 = vpop.xlane.xlu0 %1040
        %v1042 = vsel %vm619, %v1037, -inf
        %1043 = vmax.xlane.f32.xlu0 %v1042
        %v1044 = vpop.xlane.xlu0 %1043
        %v1045 = vsub.f32 %v1009, %v1041
        %v1046 = vsub.f32 %v1037, %v1044
        %v1047 = vmul.f32 %v1045, 1.442695
        %v1048 = vpow.pop %v1047
        %v1049 = vmul.f32 %v1046, 1.442695
        %v1050 = vpow.pop %v1049
        %v1051 = vsel %vm619, %v1048, 0.0
        %1052 = vadd.xlane.f32.xlu0 %v1051
        %v1053 = vpop.xlane.xlu0 %1052
        %v1054 = vsel %vm619, %v1050, 0.0
        %1055 = vadd.xlane.f32.xlu0 %v1054
        %v1056 = vpop.xlane.xlu0 %1055
        %v1057 = vrcp.pop %v1053
        %v1058 = vmul.f32 %v1053, %v1057
        %v1059 = vsub.f32 1.0, %v1058
        %v1060 = vmul.f32 %v1057, %v1059
        %v1061 = vadd.f32 %v1057, %v1060
        %vm1062 = vweird.f32 %v1053
        %vm1063 = vweird.f32 %v1057
        %vm1064 = vmor %vm1062, %vm1063
        %v1065 = vsel %vm1064, %v1057, %v1061
        %v1066 = vand.u32 2147483647, %v1053
        %vm1067 = vcmp.eq.f32.partialorder %v1066, 8.507059e+37
        %v1068 = vand.u32 %v1053, 2147483648
        %v1069 = vor.u32 1.1754944e-38, %v1068
        %v1070 = vsel %vm1067, %v1069, %v1065
        %v1071 = vrcp.pop %v1056
        %v1072 = vmul.f32 %v1056, %v1071
        %v1073 = vsub.f32 1.0, %v1072
        %v1074 = vmul.f32 %v1071, %v1073
        %v1075 = vadd.f32 %v1071, %v1074
        %vm1076 = vweird.f32 %v1056
        %vm1077 = vweird.f32 %v1071
        %vm1078 = vmor %vm1076, %vm1077
        %v1079 = vsel %vm1078, %v1071, %v1075
        %v1080 = vand.u32 2147483647, %v1056
        %vm1081 = vcmp.eq.f32.partialorder %v1080, 8.507059e+37
        %v1082 = vand.u32 %v1056, 2147483648
        %v1083 = vor.u32 1.1754944e-38, %v1082
        %v1084 = vsel %vm1081, %v1083, %v1079
        %v1085 = vmul.f32 %v1048, %v1070
        %v1086 = vmul.f32 %v1050, %v1084
        %1087 = vrot.lane.b32.xlu0 %v601, 112
        %v1088 = vpop.permute.xlu0 %1087
        %v1091 = vsel %vm619, %v1085, 0
        %1093 = vmatpush.msra.mxu0 0.0
        %1094 = vmatpush.msra.mxu0 0.0
        %1095 = vmatpush.msra.mxu0 0.0
        %1096 = vmatpush.msra.mxu0 0.0
        %1097 = vmatpush.msra.mxu0 0.0
        %1098 = vmatpush.msra.mxu0 0.0
        %1099 = vmatpush.msra.mxu0 0.0
        %1100 = vmatpush.msra.mxu0 0.0
        %1101 = vmatpush.msra.mxu0 0.0
        %1102 = vmatpush.msra.mxu0 0.0
        %1103 = vmatpush.msra.mxu0 0.0
        %1104 = vmatpush.msra.mxu0 0.0
        %1105 = vmatpush.msra.mxu0 0.0
        %1106 = vmatpush.msra.mxu0 0.0
        %1107 = vmatpush.msra.mxu0 0.0
        %1108 = vmatpush.msra.mxu0 %v1088
        %1109 = vmatmul.f32.gmra.mxu0 %v1091
        %v1110 = vpop.f32.mrf.mxu0
        %v1111 = vadd.f32 0.0, %v1110
        %1112 = vdwg.mxu0
        %1113 = vrot.lane.b32.xlu0 %v604, 112
        %v1114 = vpop.permute.xlu0 %1113
        %v1117 = vsel %vm619, %v1086, 0
        %1119 = vmatpush.msra.mxu0 0.0
        %1120 = vmatpush.msra.mxu0 0.0
        %1121 = vmatpush.msra.mxu0 0.0
        %1122 = vmatpush.msra.mxu0 0.0
        %1123 = vmatpush.msra.mxu0 0.0
        %1124 = vmatpush.msra.mxu0 0.0
        %1125 = vmatpush.msra.mxu0 0.0
        %1126 = vmatpush.msra.mxu0 0.0
        %1127 = vmatpush.msra.mxu0 0.0
        %1128 = vmatpush.msra.mxu0 0.0
        %1129 = vmatpush.msra.mxu0 0.0
        %1130 = vmatpush.msra.mxu0 0.0
        %1131 = vmatpush.msra.mxu0 0.0
        %1132 = vmatpush.msra.mxu0 0.0
        %1133 = vmatpush.msra.mxu0 0.0
        %1134 = vmatpush.msra.mxu0 %v1114
        %1135 = vmatmul.f32.gmra.mxu0 %v1117
        %v1136 = vpop.f32.mrf.mxu0
        %v1137 = vadd.f32 0.0, %v1136
        %1138 = vdwg.mxu0
        %v1140 = vsel %vm619, %v1111, 0
        %v1143 = vsel %vm619, %v1137, 0
        %1145 = vmatpush.msra.mxu0 0.0
        %1146 = vmatpush.msra.mxu0 0.0
        %1147 = vmatpush.msra.mxu0 0.0
        %1148 = vmatpush.msra.mxu0 0.0
        %1149 = vmatpush.msra.mxu0 0.0
        %1150 = vmatpush.msra.mxu0 0.0
        %1151 = vmatpush.msra.mxu0 0.0
        %1152 = vmatpush.msra.mxu0 0.0
        %1153 = vmatpush.msra.mxu0 0.0
        %1154 = vmatpush.msra.mxu0 0.0
        %1155 = vmatpush.msra.mxu0 0.0
        %1156 = vmatpush.msra.mxu0 0.0
        %1157 = vmatpush.msra.mxu0 0.0
        %1158 = vmatpush.msra.mxu0 0.0
        %1159 = vmatpush.msra.mxu0 0.0
        %1160 = vmatpush.msra.mxu0 %v534
        %1161 = vmatmul.f32.gmra.mxu0 %v1140
        %v1162 = vpop.f32.mrf.mxu0
        %v1163 = vadd.f32 0.0, %v1162
        %1164 = vmatmul.f32.gmra.mxu0 %v1143
        %v1165 = vpop.f32.mrf.mxu0
        %v1166 = vadd.f32 0.0, %v1165
        %1167 = vdwg.mxu0
        %v1168 = vadd.f32 %v978, %v1163
        %v1169 = vadd.f32 %v981, %v1166
        %1170 = vrot.lane.b32.xlu0 %v607, 104
        %v1171 = vpop.permute.xlu0 %1170
        %1172 = vrot.lane.b32.xlu0 %v614, 72
        %v1173 = vpop.permute.xlu0 %1172
        %v1174 = vsel %vm619, %v1171, 0
        %v1176 = vsel %vm619, %v1173, 0
        %1178 = vmatpush.xpose.msra.mxu0 0.0
        %1179 = vmatpush.xpose.msra.mxu0 0.0
        %1180 = vmatpush.xpose.msra.mxu0 0.0
        %1181 = vmatpush.xpose.msra.mxu0 0.0
        %1182 = vmatpush.xpose.msra.mxu0 0.0
        %1183 = vmatpush.xpose.msra.mxu0 0.0
        %1184 = vmatpush.xpose.msra.mxu0 0.0
        %1185 = vmatpush.xpose.msra.mxu0 0.0
        %1186 = vmatpush.xpose.msra.mxu0 0.0
        %1187 = vmatpush.xpose.msra.mxu0 0.0
        %1188 = vmatpush.xpose.msra.mxu0 0.0
        %1189 = vmatpush.xpose.msra.mxu0 0.0
        %1190 = vmatpush.xpose.msra.mxu0 0.0
        %1191 = vmatpush.xpose.msra.mxu0 0.0
        %1192 = vmatpush.xpose.msra.mxu0 0.0
        %1193 = vmatpush.xpose.msra.mxu0 %v1176
        %1194 = vmatmul.f32.gmra.mxu0 %v1174
        %v1195 = vpop.f32.mrf.mxu0
        %v1196 = vadd.f32 0.0, %v1195
        %1197 = vdwg.mxu0
        %1198 = vrot.lane.b32.xlu0 %v608, 104
        %v1199 = vpop.permute.xlu0 %1198
        %1200 = vrot.lane.b32.xlu0 %v615, 72
        %v1201 = vpop.permute.xlu0 %1200
        %v1202 = vsel %vm619, %v1199, 0
        %v1204 = vsel %vm619, %v1201, 0
        %1206 = vmatpush.xpose.msra.mxu0 0.0
        %1207 = vmatpush.xpose.msra.mxu0 0.0
        %1208 = vmatpush.xpose.msra.mxu0 0.0
        %1209 = vmatpush.xpose.msra.mxu0 0.0
        %1210 = vmatpush.xpose.msra.mxu0 0.0
        %1211 = vmatpush.xpose.msra.mxu0 0.0
        %1212 = vmatpush.xpose.msra.mxu0 0.0
        %1213 = vmatpush.xpose.msra.mxu0 0.0
        %1214 = vmatpush.xpose.msra.mxu0 0.0
        %1215 = vmatpush.xpose.msra.mxu0 0.0
        %1216 = vmatpush.xpose.msra.mxu0 0.0
        %1217 = vmatpush.xpose.msra.mxu0 0.0
        %1218 = vmatpush.xpose.msra.mxu0 0.0
        %1219 = vmatpush.xpose.msra.mxu0 0.0
        %1220 = vmatpush.xpose.msra.mxu0 0.0
        %1221 = vmatpush.xpose.msra.mxu0 %v1204
        %1222 = vmatmul.f32.gmra.mxu0 %v1202
        %v1223 = vpop.f32.mrf.mxu0
        %v1224 = vadd.f32 0.0, %v1223
        %1225 = vdwg.mxu0
        %v1226 = vsel %vm619, %v1196, -inf
        %1227 = vmax.xlane.f32.xlu0 %v1226
        %v1228 = vpop.xlane.xlu0 %1227
        %v1229 = vsel %vm619, %v1224, -inf
        %1230 = vmax.xlane.f32.xlu0 %v1229
        %v1231 = vpop.xlane.xlu0 %1230
        %v1232 = vsub.f32 %v1196, %v1228
        %v1233 = vsub.f32 %v1224, %v1231
        %v1234 = vmul.f32 %v1232, 1.442695
        %v1235 = vpow.pop %v1234
        %v1236 = vmul.f32 %v1233, 1.442695
        %v1237 = vpow.pop %v1236
        %v1238 = vsel %vm619, %v1235, 0.0
        %1239 = vadd.xlane.f32.xlu0 %v1238
        %v1240 = vpop.xlane.xlu0 %1239
        %v1241 = vsel %vm619, %v1237, 0.0
        %1242 = vadd.xlane.f32.xlu0 %v1241
        %v1243 = vpop.xlane.xlu0 %1242
        %v1244 = vrcp.pop %v1240
        %v1245 = vmul.f32 %v1240, %v1244
        %v1246 = vsub.f32 1.0, %v1245
        %v1247 = vmul.f32 %v1244, %v1246
        %v1248 = vadd.f32 %v1244, %v1247
        %vm1249 = vweird.f32 %v1240
        %vm1250 = vweird.f32 %v1244
        %vm1251 = vmor %vm1249, %vm1250
        %v1252 = vsel %vm1251, %v1244, %v1248
        %v1253 = vand.u32 2147483647, %v1240
        %vm1254 = vcmp.eq.f32.partialorder %v1253, 8.507059e+37
        %v1255 = vand.u32 %v1240, 2147483648
        %v1256 = vor.u32 1.1754944e-38, %v1255
        %v1257 = vsel %vm1254, %v1256, %v1252
        %v1258 = vrcp.pop %v1243
        %v1259 = vmul.f32 %v1243, %v1258
        %v1260 = vsub.f32 1.0, %v1259
        %v1261 = vmul.f32 %v1258, %v1260
        %v1262 = vadd.f32 %v1258, %v1261
        %vm1263 = vweird.f32 %v1243
        %vm1264 = vweird.f32 %v1258
        %vm1265 = vmor %vm1263, %vm1264
        %v1266 = vsel %vm1265, %v1258, %v1262
        %v1267 = vand.u32 2147483647, %v1243
        %vm1268 = vcmp.eq.f32.partialorder %v1267, 8.507059e+37
        %v1269 = vand.u32 %v1243, 2147483648
        %v1270 = vor.u32 1.1754944e-38, %v1269
        %v1271 = vsel %vm1268, %v1270, %v1266
        %v1272 = vmul.f32 %v1235, %v1257
        %v1273 = vmul.f32 %v1237, %v1271
        %1274 = vrot.lane.b32.xlu0 %v601, 104
        %v1275 = vpop.permute.xlu0 %1274
        %v1278 = vsel %vm619, %v1272, 0
        %1280 = vmatpush.msra.mxu0 0.0
        %1281 = vmatpush.msra.mxu0 0.0
        %1282 = vmatpush.msra.mxu0 0.0
        %1283 = vmatpush.msra.mxu0 0.0
        %1284 = vmatpush.msra.mxu0 0.0
        %1285 = vmatpush.msra.mxu0 0.0
        %1286 = vmatpush.msra.mxu0 0.0
        %1287 = vmatpush.msra.mxu0 0.0
        %1288 = vmatpush.msra.mxu0 0.0
        %1289 = vmatpush.msra.mxu0 0.0
        %1290 = vmatpush.msra.mxu0 0.0
        %1291 = vmatpush.msra.mxu0 0.0
        %1292 = vmatpush.msra.mxu0 0.0
        %1293 = vmatpush.msra.mxu0 0.0
        %1294 = vmatpush.msra.mxu0 0.0
        %1295 = vmatpush.msra.mxu0 %v1275
        %1296 = vmatmul.f32.gmra.mxu0 %v1278
        %v1297 = vpop.f32.mrf.mxu0
        %v1298 = vadd.f32 0.0, %v1297
        %1299 = vdwg.mxu0
        %1300 = vrot.lane.b32.xlu0 %v604, 104
        %v1301 = vpop.permute.xlu0 %1300
        %v1304 = vsel %vm619, %v1273, 0
        %1306 = vmatpush.msra.mxu0 0.0
        %1307 = vmatpush.msra.mxu0 0.0
        %1308 = vmatpush.msra.mxu0 0.0
        %1309 = vmatpush.msra.mxu0 0.0
        %1310 = vmatpush.msra.mxu0 0.0
        %1311 = vmatpush.msra.mxu0 0.0
        %1312 = vmatpush.msra.mxu0 0.0
        %1313 = vmatpush.msra.mxu0 0.0
        %1314 = vmatpush.msra.mxu0 0.0
        %1315 = vmatpush.msra.mxu0 0.0
        %1316 = vmatpush.msra.mxu0 0.0
        %1317 = vmatpush.msra.mxu0 0.0
        %1318 = vmatpush.msra.mxu0 0.0
        %1319 = vmatpush.msra.mxu0 0.0
        %1320 = vmatpush.msra.mxu0 0.0
        %1321 = vmatpush.msra.mxu0 %v1301
        %1322 = vmatmul.f32.gmra.mxu0 %v1304
        %v1323 = vpop.f32.mrf.mxu0
        %v1324 = vadd.f32 0.0, %v1323
        %1325 = vdwg.mxu0
        %v1327 = vsel %vm619, %v1298, 0
        %v1330 = vsel %vm619, %v1324, 0
        %1332 = vmatpush.msra.mxu0 0.0
        %1333 = vmatpush.msra.mxu0 0.0
        %1334 = vmatpush.msra.mxu0 0.0
        %1335 = vmatpush.msra.mxu0 0.0
        %1336 = vmatpush.msra.mxu0 0.0
        %1337 = vmatpush.msra.mxu0 0.0
        %1338 = vmatpush.msra.mxu0 0.0
        %1339 = vmatpush.msra.mxu0 0.0
        %1340 = vmatpush.msra.mxu0 0.0
        %1341 = vmatpush.msra.mxu0 0.0
        %1342 = vmatpush.msra.mxu0 0.0
        %1343 = vmatpush.msra.mxu0 0.0
        %1344 = vmatpush.msra.mxu0 0.0
        %1345 = vmatpush.msra.mxu0 0.0
        %1346 = vmatpush.msra.mxu0 0.0
        %1347 = vmatpush.msra.mxu0 %v535
        %1348 = vmatmul.f32.gmra.mxu0 %v1327
        %v1349 = vpop.f32.mrf.mxu0
        %v1350 = vadd.f32 0.0, %v1349
        %1351 = vmatmul.f32.gmra.mxu0 %v1330
        %v1352 = vpop.f32.mrf.mxu0
        %v1353 = vadd.f32 0.0, %v1352
        %1354 = vdwg.mxu0
        %v1355 = vadd.f32 %v1168, %v1350
        %v1356 = vadd.f32 %v1169, %v1353
        %v1357 = vperm.slane %v530, 3
        %v1358 = vadd.f32 %v1355, %v1357
        %v1359 = vadd.f32 %v1356, %v1357
        %v1360 = vadd.f32 %v526, %v1358
        %v1361 = vadd.f32 %v527, %v1359
        %v1362 = vsel %vm542, %v1360, 0.0
        %1363 = vadd.xlane.f32.xlu0 %v1362
        %v1364 = vpop.xlane.xlu0 %1363
        %v1365 = vsel %vm542, %v1361, 0.0
        %1366 = vadd.xlane.f32.xlu0 %v1365
        %v1367 = vpop.xlane.xlu0 %1366
        %v1368 = vrcp.pop 32.0
        %v1369 = vmul.f32 32.0, %v1368
        %v1370 = vsub.f32 1.0, %v1369
        %v1371 = vmul.f32 %v1368, %v1370
        %v1372 = vadd.f32 %v1368, %v1371
        %vm1373 = vweird.f32 %v1368
        %v1374 = vsel %vm1373, %v1368, %v1372
        %v1375 = vmul.f32 %v1364, %v1374
        %v1376 = vmul.f32 %v1367, %v1374
        %v1377 = vsub.f32 %v1360, %v1375
        %v1378 = vsub.f32 %v1361, %v1376
        %v1379 = vmul.f32 %v1377, %v1377
        %v1380 = vmul.f32 %v1378, %v1378
        %v1381 = vsel %vm542, %v1379, 0.0
        %1382 = vadd.xlane.f32.xlu0 %v1381
        %v1383 = vpop.xlane.xlu0 %1382
        %v1384 = vsel %vm542, %v1380, 0.0
        %1385 = vadd.xlane.f32.xlu0 %v1384
        %v1386 = vpop.xlane.xlu0 %1385
        %v1387 = vmul.f32 %v1383, %v1374
        %v1388 = vmul.f32 %v1386, %v1374
        %v1389 = vadd.f32 %v1387, 1e-05
        %v1390 = vadd.f32 %v1388, 1e-05
        %v1391 = vrsqrt.pop %v1389
        %v1392 = vmul.f32 %v1391, %v1389
        %v1393 = vmul.f32 %v1392, %v1391
        %v1394 = vmul.f32 0.5, %v1393
        %v1395 = vsub.f32 1.5, %v1394
        %v1396 = vmul.f32 %v1391, %v1395
        %vm1397 = vweird.f32 %v1389
        %vm1398 = vweird.f32 %v1391
        %vm1399 = vmor %vm1397, %vm1398
        %v1400 = vsel %vm1399, %v1391, %v1396
        %v1401 = vrsqrt.pop %v1390
        %v1402 = vmul.f32 %v1401, %v1390
        %v1403 = vmul.f32 %v1402, %v1401
        %v1404 = vmul.f32 0.5, %v1403
        %v1405 = vsub.f32 1.5, %v1404
        %v1406 = vmul.f32 %v1401, %v1405
        %vm1407 = vweird.f32 %v1390
        %vm1408 = vweird.f32 %v1401
        %vm1409 = vmor %vm1407, %vm1408
        %v1410 = vsel %vm1409, %v1401, %v1406
        %v1411 = vmul.f32 %v1377, %v1400
        %v1412 = vmul.f32 %v1378, %v1410
        %v1413 = vperm.slane %v530, 4
        %v1414 = vmul.f32 %v1411, %v1413
        %v1415 = vmul.f32 %v1412, %v1413
        %v1416 = vperm.slane %v530, 5
        %v1417 = vadd.f32 %v1414, %v1416
        %v1418 = vadd.f32 %v1415, %v1416
        %v1419 = vld [vmem:[%s407] sm:$0xff]
        %v1420 = vld [vmem:[%s407 + $0x8] sm:$0xff]
        %v1421 = vld [vmem:[%s407 + $0x10] sm:$0xff]
        %v1422 = vld [vmem:[%s407 + $0x18] sm:$0xff]
        %v1423 = vld [vmem:[%s515] sm:$0x1]
        %v1425 = vperm.slane %v1423, 0
        %v1428 = vsel %vm542, %v1417, 0
        %v1431 = vsel %vm542, %v1418, 0
        %1433 = vmatpush.msra.mxu0 0.0
        %1434 = vmatpush.msra.mxu0 0.0
        %1435 = vmatpush.msra.mxu0 0.0
        %1436 = vmatpush.msra.mxu0 0.0
        %1437 = vmatpush.msra.mxu0 0.0
        %1438 = vmatpush.msra.mxu0 0.0
        %1439 = vmatpush.msra.mxu0 0.0
        %1440 = vmatpush.msra.mxu0 0.0
        %1441 = vmatpush.msra.mxu0 0.0
        %1442 = vmatpush.msra.mxu0 0.0
        %1443 = vmatpush.msra.mxu0 0.0
        %1444 = vmatpush.msra.mxu0 0.0
        %1445 = vmatpush.msra.mxu0 %v1422
        %1446 = vmatpush.msra.mxu0 %v1421
        %1447 = vmatpush.msra.mxu0 %v1420
        %1448 = vmatpush.msra.mxu0 %v1419
        %1449 = vmatmul.f32.gmra.mxu0 %v1428
        %v1450 = vpop.f32.mrf.mxu0
        %v1451 = vadd.f32 %v1425, %v1450
        %1452 = vmatmul.f32.gmra.mxu0 %v1431
        %v1453 = vpop.f32.mrf.mxu0
        %v1454 = vadd.f32 %v1425, %v1453
        %1455 = vdwg.mxu0
        %v1456 = vmax.f32 %v1451, 0.0
        %v1457 = vmax.f32 %v1454, 0.0
        %v1458 = vld [vmem:[%s507] sm:$0xff]
        %v1459 = vld [vmem:[%s507 + $0x8] sm:$0xff]
        %v1460 = vld [vmem:[%s507 + $0x10] sm:$0xff]
        %v1461 = vld [vmem:[%s507 + $0x18] sm:$0xff]
        %v1462 = vld [vmem:[%s507 + $0x20] sm:$0xff]
        %v1463 = vld [vmem:[%s507 + $0x28] sm:$0xff]
        %v1464 = vld [vmem:[%s507 + $0x30] sm:$0xff]
        %v1465 = vld [vmem:[%s507 + $0x38] sm:$0xff]
        %v1466 = vperm.slane %v531, 0
        %vm1467 = vcmask 523264
        %v1469 = vsel %vm1467, %v1456, 0
        %v1472 = vsel %vm1467, %v1457, 0
        %1474 = vmatpush.msra.mxu0 0.0
        %1475 = vmatpush.msra.mxu0 0.0
        %1476 = vmatpush.msra.mxu0 0.0
        %1477 = vmatpush.msra.mxu0 0.0
        %1478 = vmatpush.msra.mxu0 0.0
        %1479 = vmatpush.msra.mxu0 0.0
        %1480 = vmatpush.msra.mxu0 0.0
        %1481 = vmatpush.msra.mxu0 0.0
        %1482 = vmatpush.msra.mxu0 %v1465
        %1483 = vmatpush.msra.mxu0 %v1464
        %1484 = vmatpush.msra.mxu0 %v1463
        %1485 = vmatpush.msra.mxu0 %v1462
        %1486 = vmatpush.msra.mxu0 %v1461
        %1487 = vmatpush.msra.mxu0 %v1460
        %1488 = vmatpush.msra.mxu0 %v1459
        %1489 = vmatpush.msra.mxu0 %v1458
        %1490 = vmatmul.f32.gmra.mxu0 %v1469
        %v1491 = vpop.f32.mrf.mxu0
        %v1492 = vadd.f32 %v1466, %v1491
        %1493 = vmatmul.f32.gmra.mxu0 %v1472
        %v1494 = vpop.f32.mrf.mxu0
        %v1495 = vadd.f32 %v1466, %v1494
        %1496 = vdwg.mxu0
        %v1497 = vadd.f32 %v1417, %v1492
        %v1498 = vadd.f32 %v1418, %v1495
        %v1499 = vsel %vm542, %v1497, 0.0
        %1500 = vadd.xlane.f32.xlu0 %v1499
        %v1501 = vpop.xlane.xlu0 %1500
        %v1502 = vsel %vm542, %v1498, 0.0
        %1503 = vadd.xlane.f32.xlu0 %v1502
        %v1504 = vpop.xlane.xlu0 %1503
        %v1505 = vmul.f32 %v1501, %v1374
        %v1506 = vmul.f32 %v1504, %v1374
        %v1507 = vsub.f32 %v1497, %v1505
        %v1508 = vsub.f32 %v1498, %v1506
        %v1509 = vmul.f32 %v1507, %v1507
        %v1510 = vmul.f32 %v1508, %v1508
        %v1511 = vsel %vm542, %v1509, 0.0
        %1512 = vadd.xlane.f32.xlu0 %v1511
        %v1513 = vpop.xlane.xlu0 %1512
        %v1514 = vsel %vm542, %v1510, 0.0
        %1515 = vadd.xlane.f32.xlu0 %v1514
        %v1516 = vpop.xlane.xlu0 %1515
        %v1517 = vmul.f32 %v1513, %v1374
        %v1518 = vmul.f32 %v1516, %v1374
        %v1519 = vadd.f32 %v1517, 1e-05
        %v1520 = vadd.f32 %v1518, 1e-05
        %v1521 = vrsqrt.pop %v1519
        %v1522 = vmul.f32 %v1521, %v1519
        %v1523 = vmul.f32 %v1522, %v1521
        %v1524 = vmul.f32 0.5, %v1523
        %v1525 = vsub.f32 1.5, %v1524
        %v1526 = vmul.f32 %v1521, %v1525
        %vm1527 = vweird.f32 %v1519
        %vm1528 = vweird.f32 %v1521
        %vm1529 = vmor %vm1527, %vm1528
        %v1530 = vsel %vm1529, %v1521, %v1526
        %v1531 = vrsqrt.pop %v1520
        %v1532 = vmul.f32 %v1531, %v1520
        %v1533 = vmul.f32 %v1532, %v1531
        %v1534 = vmul.f32 0.5, %v1533
        %v1535 = vsub.f32 1.5, %v1534
        %v1536 = vmul.f32 %v1531, %v1535
        %vm1537 = vweird.f32 %v1520
        %vm1538 = vweird.f32 %v1531
        %vm1539 = vmor %vm1537, %vm1538
        %v1540 = vsel %vm1539, %v1531, %v1536
        %v1541 = vmul.f32 %v1507, %v1530
        %v1542 = vmul.f32 %v1508, %v1540
        %v1543 = vperm.slane %v530, 6
        %v1544 = vmul.f32 %v1541, %v1543
        %v1545 = vmul.f32 %v1542, %v1543
        %v1546 = vperm.slane %v530, 7
        %v1547 = vadd.f32 %v1544, %v1546
        %v1548 = vadd.f32 %v1545, %v1546
        %1549 = vst.msk [vmem:[#allocation2] sm:$0xff] %vm542, %v1547
        %1550 = vst.msk [vmem:[#allocation2 + $0x8] sm:$0xff] %vm542, %v1548
        %p1551 = scmp.eq.s32.totalorder %s29, 1
        // Predicated region
        $region65: #{tpu_custom_call.1} parent=55 // pred_check
          %p1552 = pneg %p1551
        $region66: #{tpu_custom_call.1} parent=55 // pred_check_branch
          %1554 = sbr.rel (%p1552) target = $region68
        $region67: #{tpu_custom_call.1} parent=55 // pred_region
          %1555 = vst.msk [vmem:[#allocation6] sm:$0xff] %vm542, %v1547
          %1556 = vst.msk [vmem:[#allocation6 + $0x8] sm:$0xff] %vm542, %v1548
        $region68: #{tpu_custom_call.1} parent=55 // pred_fallthru
          _
        // Predicated region
        $region69: #{tpu_custom_call.1} parent=55 // pred_check
          %p1557 = pneg %p288
        $region70: #{tpu_custom_call.1} parent=55 // pred_check_branch
          %1559 = sbr.rel (%p1557) target = $region72
        $region71: #{tpu_custom_call.1} parent=55 // pred_region
          %s1560 = smul.u32 2, %s28
          %1562 = vsyncadd [#allocation5], 0
          %s1563 = smul.addr %s1560, 8
          %s1564 = scalar_lea.hbm %s9, %s1563
          %s1565 = sshll.u32 [#allocation6], 4
          %s1566 = int_to_ptr.vmem [resolvable:$true] %s1565
          %s1567 = sshll.u32 %s1564, 4
          %s1568 = int_to_ptr.hbm [resolvable:$true] %s1567
          %1573 = dma.vmem_to_hbm [thread:$0]  %s1566, 256, %s1568, [#allocation5], 128, 128, 8
        $region72: #{tpu_custom_call.1} parent=55 // pred_fallthru
          _
        // Predicated region
        $region73: #{tpu_custom_call.1} parent=55 // pred_check
          %p1574 = pneg %p288
        $region74: #{tpu_custom_call.1} parent=55 // pred_check_branch
          %1576 = sbr.rel (%p1574) target = $region76
        $region75: #{tpu_custom_call.1} parent=55 // pred_region
          %1578 = dma.done [#allocation5], 256
        $region76: #{tpu_custom_call.1} parent=55 // pred_fallthru
          _
      $region56: #{tpu_custom_call.1} parent=5 // pred_fallthru
        _
      %p1579 = scmp.le.s32.totalorder 2, %s19
      // Predicated region
      $region77: #{tpu_custom_call.1} parent=5 // pred_check
        %p1580 = pneg %p1579
      $region78: #{tpu_custom_call.1} parent=5 // pred_check_branch
        %1582 = sbr.rel (%p1580) target = $region80
      $region79: #{tpu_custom_call.1} parent=5 // pred_region
        %s1583 = ssub.s32 %s19, 2
      $region80: #{tpu_custom_call.1} parent=5 // pred_fallthru
        _
    $region6: #{tpu_custom_call.1} parent=1 // loop_footer
      %s23 = sadd.s32 1, %s19
    $region7: #{tpu_custom_call.1} parent=1 // loop_footer_branch
      %18 = sbr.rel target = $region3
    $region8: #{tpu_custom_call.1} parent=1 // loop_exit
      _
    %1584 = vsyncpa [#allocation4], 1
    %s1585 = scalar_lea.sflag [#allocation4], 1
    %1586 = vsyncpa %s1585, 1
    %1587 = vsyncpa [#allocation5], 1
    %s1588 = scalar_lea.sflag [#allocation5], 1
    %1589 = vsyncpa %s1588, 1

</llo_original>
